<compile_context>
chip_gen: v7x
topology: tpu7x:2x2x1
jax: 0.10.0
libtpu: 0.0.40
codegen_flags: <defaults>
</compile_context>

<pallas_src>
import functools

import jax
import jax.numpy as jnp
import numpy as np
from jax import lax
from jax.experimental import pallas as pl
from jax.experimental.pallas import tpu as pltpu


# ----------------------------------------------------------------------------
# In-kernel helpers
# ----------------------------------------------------------------------------
def _shift_lanes(v, d):
    """out[:, i] = v[:, i + d] if 0 <= i + d < HW else 0   (static |d| < HW)."""
    if d == 0:
        return v
    c, hw = v.shape
    z = jnp.zeros((c, abs(d)), v.dtype)
    if d > 0:
        return jnp.concatenate([v[:, d:], z], axis=1)
    return jnp.concatenate([z, v[:, :hw + d]], axis=1)


def _approx_recip(d):
    """1/d via the EUP approx reciprocal + one Newton step (~f32 accurate)."""
    r = pl.reciprocal(d, approx=True)
    return r * (2.0 - d * r)


def _pconv3x3(xmc, w_ref, img_w, mask_l, mask_r, compute_dtype):
    """3x3 partial-conv core in lane-dense (C, H*W) orientation.

    xmc   : (Cin+1, HW) f32 -- masked input channels + channel-summed mask.
    w_ref : (3, Cout+1, 3*(Cin+1)) packed weights (kh rows; kw fused along K).
    Returns (Cout+1, HW) f32 accumulator; last row is the window mask-sum.
    """
    acc = jnp.zeros((w_ref.shape[1], xmc.shape[1]), jnp.float32)
    for r in range(3):                                  # kh = r, dh = r - 1
        dh = r - 1
        left = _shift_lanes(xmc, dh * img_w - 1) * mask_l    # kw = 0 (dw = -1)
        mid = _shift_lanes(xmc, dh * img_w)                  # kw = 1 (dw =  0)
        right = _shift_lanes(xmc, dh * img_w + 1) * mask_r   # kw = 2 (dw = +1)
        patch = jnp.concatenate([left, mid, right], axis=0)  # (3*(Cin+1), HW)
        acc = acc + jnp.dot(w_ref[r], patch.astype(compute_dtype),
                            preferred_element_type=jnp.float32)
    return acc


# ----------------------------------------------------------------------------
# Fused kernel: one batch element per grid step, everything stays in vregs.
# ----------------------------------------------------------------------------
def _fused_basic_kernel(x_ref, m_ref, a1_ref, w1_ref, b1_ref,
                        a2_ref, w2_ref, b2_ref, *rest,
                        img_h, img_w, apply_prelu1, has_shortcut,
                        compute_dtype):
    if has_shortcut:
        wsc_ref, bsc_ref, out_ref, mout_ref = rest
    else:
        out_ref, mout_ref = rest

    hw = img_h * img_w
    c0 = x_ref.shape[1]
    c1 = b1_ref.shape[0]
    c2 = out_ref.shape[1]

    x = x_ref[0]                                    # (C0, HW) f32, lane-dense
    m = m_ref[0]

    # Column-validity masks for the +/-1 width shifts (row shifts are handled
    # by the zero fill of the flat lane shift).
    w_idx = lax.broadcasted_iota(jnp.int32, (1, hw), 1) % img_w
    mask_l = (w_idx >= 1).astype(jnp.float32)
    mask_r = (w_idx <= img_w - 2).astype(jnp.float32)

    # ---- PReLU_1 + mask multiply (hoisted: once per pixel, not per tap) -----
    if apply_prelu1:
        xa = jnp.where(x > 0.0, x, a1_ref[...] * x)
    else:
        xa = x
    mc = jnp.sum(m, axis=0, keepdims=True)           # (1, HW) channel-summed mask
    xmc1 = jnp.concatenate([xa * m, mc], axis=0)     # (C0+1, HW)

    # ---- conv1 (mask-sum fused into the same MXU dots) ----------------------
    acc1 = _pconv3x3(xmc1, w1_ref, img_w, mask_l, mask_r, compute_dtype)
    msum1 = acc1[c1:c1 + 1, :]                       # (1, HW)
    um1 = jnp.clip(msum1, 0.0, 1.0)
    ratio1 = (9.0 * c0) * _approx_recip(msum1 + 1e-8) * um1
    # PartialConv2d: out = ((raw - b)*ratio + b)*um with raw = conv(x*m) + b
    y1 = (acc1[:c1, :] * ratio1 + b1_ref[...]) * um1            # (C1, HW)

    # ---- PReLU_2 + mask multiply, conv2 -------------------------------------
    y1a = jnp.where(y1 > 0.0, y1, a2_ref[...] * y1)
    xmc2 = jnp.concatenate([y1a * um1, um1], axis=0)            # (C1+1, HW)
    acc2 = _pconv3x3(xmc2, w2_ref, img_w, mask_l, mask_r, compute_dtype)
    msum2 = acc2[c2:c2 + 1, :]
    um2 = jnp.clip(msum2, 0.0, 1.0)
    ratio2 = (9.0 * c1) * _approx_recip(msum2 + 1e-8) * um2
    y2 = (acc2[:c2, :] * ratio2 + b2_ref[...]) * um2            # (C2, HW)

    # ---- shortcut + residual -------------------------------------------------
    if has_shortcut:     # 1x1 PartialConv2d with mask_in=None == matmul + bias
        sc = jnp.dot(wsc_ref[...], x.astype(compute_dtype),
                     preferred_element_type=jnp.float32) + bsc_ref[...]
    else:                # identity shortcut: plain VPU add (no eye-matmul)
        sc = x

    out_ref[0] = (y2 + sc).astype(out_ref.dtype)                # lane-dense store
    mout_ref[0] = um2.astype(mout_ref.dtype)                    # (1, HW) only


# ----------------------------------------------------------------------------
# Parameter packing (host side, one-time)
# ----------------------------------------------------------------------------
def _pack_w3x3(w_hwio, mask_weight, compute_dtype):
    """(3,3,Cin,Cout) HWIO -> (3, Cout+1, 3*(Cin+1)).

    Leading axis = kernel row kh; contraction axis = three (Cin+1) blocks for
    kw=0,1,2; the last channel of each block carries the mask-sum path (weight
    `mask_weight`) accumulated into the extra output row."""
    _, _, cin, cout = w_hwio.shape
    cp = cin + 1
    wp = jnp.zeros((3, cout + 1, 3, cp), jnp.float32)
    wp = wp.at[:, :cout, :, :cin].set(
        jnp.transpose(w_hwio.astype(jnp.float32), (0, 3, 1, 2)))
    wp = wp.at[:, cout, :, cin].set(float(mask_weight))
    return wp.reshape(3, cout + 1, 3 * cp).astype(compute_dtype)


# ----------------------------------------------------------------------------
# Public wrapper -- PyTorch-native NCHW in / NCHW out.
# ----------------------------------------------------------------------------
def basic_forward(x, mask=None, params=None, *,
                  str_type='relu-conv-relu-conv',
                  matmul_dtype=jnp.bfloat16):
    N, C0, H, W = x.shape
    HW = H * W
    if mask is None:
        mask = jnp.ones_like(x)
    C1 = params['w1'].shape[-1]
    C2 = params['w2'].shape[-1]
    has_shortcut = (C0 != C2)
    apply_prelu1 = (str_type == 'relu-conv-relu-conv')

    # Lane-dense inputs: free reshape of NCHW, no host transpose.
    x_l = x.reshape(N, C0, HW).astype(jnp.float32)
    m_l = mask.reshape(N, C0, HW).astype(jnp.float32)

    w1p = _pack_w3x3(params['w1'], 1.0, matmul_dtype)
    w2p = _pack_w3x3(params['w2'], float(C1), matmul_dtype)  # mask conv sums C1 identical channels
    if apply_prelu1:
        a1 = params['a1'].reshape(C0, 1).astype(jnp.float32)
    else:
        a1 = jnp.zeros((C0, 1), jnp.float32)
    b1 = params['b1'].reshape(C1, 1).astype(jnp.float32)
    a2 = params['a2'].reshape(C1, 1).astype(jnp.float32)
    b2 = params['b2'].reshape(C2, 1).astype(jnp.float32)

    args = [x_l, m_l, a1, w1p, b1, a2, w2p, b2]
    in_specs = [
        pl.BlockSpec((1, C0, HW), lambda n: (n, 0, 0)),
        pl.BlockSpec((1, C0, HW), lambda n: (n, 0, 0)),
        pl.BlockSpec((C0, 1), lambda n: (0, 0)),
        pl.BlockSpec((3, C1 + 1, 3 * (C0 + 1)), lambda n: (0, 0, 0)),
        pl.BlockSpec((C1, 1), lambda n: (0, 0)),
        pl.BlockSpec((C1, 1), lambda n: (0, 0)),
        pl.BlockSpec((3, C2 + 1, 3 * (C1 + 1)), lambda n: (0, 0, 0)),
        pl.BlockSpec((C2, 1), lambda n: (0, 0)),
    ]
    if has_shortcut:
        wsc = jnp.transpose(params['w_sc'].reshape(C0, C2)).astype(matmul_dtype)
        bsc = params['b_sc'].reshape(C2, 1).astype(jnp.float32)
        args += [wsc, bsc]
        in_specs += [pl.BlockSpec((C2, C0), lambda n: (0, 0)),
                     pl.BlockSpec((C2, 1), lambda n: (0, 0))]

    kernel = functools.partial(
        _fused_basic_kernel, img_h=H, img_w=W,
        apply_prelu1=apply_prelu1, has_shortcut=has_shortcut,
        compute_dtype=matmul_dtype)

    out, mout = pl.pallas_call(
        kernel,
        out_shape=(jax.ShapeDtypeStruct((N, C2, HW), jnp.float32),
                   jax.ShapeDtypeStruct((N, 1, HW), jnp.float32)),
        grid=(N,),
        in_specs=in_specs,
        out_specs=(pl.BlockSpec((1, C2, HW), lambda n: (n, 0, 0)),
                   pl.BlockSpec((1, 1, HW), lambda n: (n, 0, 0))),
        compiler_params=pltpu.CompilerParams(
            dimension_semantics=("parallel",)),
    )(*args)

    out = out.reshape(N, C2, H, W)
    mask_out = jnp.broadcast_to(mout.reshape(N, 1, H, W), (N, C2, H, W))
    return out, mask_out


# ----------------------------------------------------------------------------
# Pure-JAX reference mirroring the PyTorch PartialConv2d / Basic math (NCHW API)
# ----------------------------------------------------------------------------
def _ref_pconv(x, m, w, b, padding, mask_in_is_none=False):
    dn = ('NHWC', 'HWIO', 'NHWC')
    inp = x if mask_in_is_none else x * m
    raw = lax.conv_general_dilated(inp, w, (1, 1), padding, dimension_numbers=dn) + b
    kh, kw, cin, _ = w.shape
    msum = lax.conv_general_dilated(m, jnp.ones((kh, kw, cin, 1), x.dtype), (1, 1),
                                    padding, dimension_numbers=dn)
    slide = float(kh * kw * cin)
    ratio = slide / (msum + 1e-8)
    um = jnp.clip(msum, 0.0, 1.0)
    ratio = ratio * um
    out = ((raw - b) * ratio + b) * um
    return out, um


def ref_basic(x_nchw, m_nchw, p):
    x = jnp.transpose(x_nchw, (0, 2, 3, 1))
    m = jnp.transpose(m_nchw, (0, 2, 3, 1))
    prelu = lambda v, a: jnp.where(v > 0, v, a * v)
    C0 = x.shape[-1]
    C2 = p['w2'].shape[-1]
    if C0 == C2:
        sc = x
    else:
        sc, _ = _ref_pconv(x, jnp.ones_like(x), p['w_sc'], p['b_sc'],
                           [(0, 0), (0, 0)], mask_in_is_none=True)
    t = prelu(x, p['a1'])
    t, m1 = _ref_pconv(t, m, p['w1'], p['b1'], [(1, 1), (1, 1)])
    t = prelu(t, p['a2'])
    t, m2 = _ref_pconv(t, jnp.broadcast_to(m1, t.shape), p['w2'], p['b2'],
                       [(1, 1), (1, 1)])
    out = t + sc
    mask_out = jnp.broadcast_to(m2, out.shape)
    return (jnp.transpose(out, (0, 3, 1, 2)),
            jnp.transpose(mask_out, (0, 3, 1, 2)))


# ----------------------------------------------------------------------------
if __name__ == "__main__":
    key = jax.random.PRNGKey(0)
    N, H, W = 2, 16, 16
    C0, C1, C2 = 4, 8, 6                 # C0 != C2 -> 1x1 partial-conv shortcut
    ks = jax.random.split(key, 8)

    x = jax.random.normal(ks[0], (N, C0, H, W), jnp.float32)
    mask = (jax.random.uniform(ks[1], (N, C0, H, W)) > 0.3).astype(jnp.float32)

    params = dict(
        a1=jnp.full((C0,), 0.25, jnp.float32),                         # PReLU init=0.25
        w1=jax.random.normal(ks[2], (3, 3, C0, C1), jnp.float32) * 0.1,
        b1=jax.random.normal(ks[3], (C1,), jnp.float32) * 0.1,
        a2=jnp.full((C1,), 0.25, jnp.float32),
        w2=jax.random.normal(ks[4], (3, 3, C1, C2), jnp.float32) * 0.1,
        b2=jax.random.normal(ks[5], (C2,), jnp.float32) * 0.1,
        w_sc=jax.random.normal(ks[6], (1, 1, C0, C2), jnp.float32) * 0.1,
        b_sc=jax.random.normal(ks[7], (C2,), jnp.float32) * 0.1,
    )

    ref_out, ref_mask = ref_basic(x, mask, params)

    # exact-path check: f32 MXU operands, tight tolerance.
    fwd_f32 = jax.jit(functools.partial(basic_forward, matmul_dtype=jnp.float32))
    out, mask_out = jax.block_until_ready(fwd_f32(x, mask, params))
    np.testing.assert_allclose(np.asarray(out), np.asarray(ref_out),
                               rtol=1e-4, atol=1e-5)
    np.testing.assert_allclose(np.asarray(mask_out), np.asarray(ref_mask),
                               rtol=0.0, atol=1e-6)

    # default fast path: bf16 MXU operands, f32 accumulation (sanity tolerance;
    # the mask-sum path is integer-exact so the mask stays bit-exact).
    fwd_fast = jax.jit(basic_forward)
    out_bf, mask_bf = jax.block_until_ready(fwd_fast(x, mask, params))
    np.testing.assert_allclose(np.asarray(out_bf), np.asarray(ref_out),
                               rtol=1e-1, atol=3e-1)
    np.testing.assert_allclose(np.asarray(mask_bf), np.asarray(ref_mask),
                               rtol=0.0, atol=1e-6)

    # identity-shortcut variant (C0 == C2 -> no 1x1 conv, plain residual add).
    params_id = dict(params)
    params_id['w2'] = jax.random.normal(ks[4], (3, 3, C1, C0), jnp.float32) * 0.1
    params_id['b2'] = jax.random.normal(ks[5], (C0,), jnp.float32) * 0.1
    del params_id['w_sc']
    del params_id['b_sc']
    ref_out2, ref_mask2 = ref_basic(x, mask, params_id)
    out2, mask_out2 = jax.block_until_ready(fwd_f32(x, mask, params_id))
    np.testing.assert_allclose(np.asarray(out2), np.asarray(ref_out2),
                               rtol=1e-4, atol=1e-5)
    np.testing.assert_allclose(np.asarray(mask_out2), np.asarray(ref_mask2),
                               rtol=0.0, atol=1e-6)

    print("KERNEL_OK")
</pallas_src>

<mosaic_0001>
module attributes {stable_mosaic.version = 11 : i64} {
  func.func @_fused_basic_kernel(%arg0: i32, %arg1: memref<1x4x256xf32, #tpu.memory_space<vmem>>, %arg2: memref<1x4x256xf32, #tpu.memory_space<vmem>>, %arg3: memref<4x1xf32, #tpu.memory_space<vmem>>, %arg4: memref<3x9x15xf32, #tpu.memory_space<vmem>>, %arg5: memref<8x1xf32, #tpu.memory_space<vmem>>, %arg6: memref<8x1xf32, #tpu.memory_space<vmem>>, %arg7: memref<3x7x27xf32, #tpu.memory_space<vmem>>, %arg8: memref<6x1xf32, #tpu.memory_space<vmem>>, %arg9: memref<6x4xf32, #tpu.memory_space<vmem>>, %arg10: memref<6x1xf32, #tpu.memory_space<vmem>>, %arg11: memref<1x6x256xf32, #tpu.memory_space<vmem>>, %arg12: memref<1x1x256xf32, #tpu.memory_space<vmem>>) attributes {dimension_semantics = [#tpu.dimension_semantics<parallel>], iteration_bounds = array<i64: 2>, scalar_prefetch = 0 : i64, scratch_operands = 0 : i64, tpu.core_type = #tpu.core_type<tc>, window_params = [{transform_indices = @transform_0, window_bounds = array<i64: 1, 4, 256>}, {transform_indices = @transform_1, window_bounds = array<i64: 1, 4, 256>}, {pipeline_mode = #tpu.pipeline_mode<synchronous>, transform_indices = @transform_2, window_bounds = array<i64: 4, 1>}, {pipeline_mode = #tpu.pipeline_mode<synchronous>, transform_indices = @transform_3, window_bounds = array<i64: 3, 9, 15>}, {pipeline_mode = #tpu.pipeline_mode<synchronous>, transform_indices = @transform_4, window_bounds = array<i64: 8, 1>}, {pipeline_mode = #tpu.pipeline_mode<synchronous>, transform_indices = @transform_5, window_bounds = array<i64: 8, 1>}, {pipeline_mode = #tpu.pipeline_mode<synchronous>, transform_indices = @transform_6, window_bounds = array<i64: 3, 7, 27>}, {pipeline_mode = #tpu.pipeline_mode<synchronous>, transform_indices = @transform_7, window_bounds = array<i64: 6, 1>}, {pipeline_mode = #tpu.pipeline_mode<synchronous>, transform_indices = @transform_8, window_bounds = array<i64: 6, 4>}, {pipeline_mode = #tpu.pipeline_mode<synchronous>, transform_indices = @transform_9, window_bounds = array<i64: 6, 1>}, {transform_indices = @transform_10, window_bounds = array<i64: 1, 6, 256>}, {transform_indices = @transform_11, window_bounds = array<i64: 1, 1, 256>}]} {
    %c0 = arith.constant 0 : index
    %c0_0 = arith.constant 0 : index
    %c0_1 = arith.constant 0 : index
    %0 = vector.load %arg1[%c0, %c0_0, %c0_1] : memref<1x4x256xf32, #tpu.memory_space<vmem>>, vector<1x4x256xf32>
    %1 = vector.shape_cast %0 : vector<1x4x256xf32> to vector<4x256xf32>
    %c0_2 = arith.constant 0 : index
    %c0_3 = arith.constant 0 : index
    %c0_4 = arith.constant 0 : index
    %2 = vector.load %arg2[%c0_2, %c0_3, %c0_4] : memref<1x4x256xf32, #tpu.memory_space<vmem>>, vector<1x4x256xf32>
    %3 = vector.shape_cast %2 : vector<1x4x256xf32> to vector<4x256xf32>
    %4 = tpu.iota {dimensions = array<i32: 1>} : vector<1x256xi32>
    %c16_i32 = arith.constant 16 : i32
    %c0_i32 = arith.constant 0 : i32
    %5 = arith.cmpi eq, %c16_i32, %c0_i32 : i32
    %c1_i32 = arith.constant 1 : i32
    %6 = arith.select %5, %c1_i32, %c16_i32 : i32
    %7 = vector.broadcast %6 : i32 to vector<1x256xi32>
    %8 = arith.remsi %4, %7 : vector<1x256xi32>
    %c0_i32_5 = arith.constant 0 : i32
    %9 = vector.broadcast %c0_i32_5 : i32 to vector<1x256xi32>
    %10 = arith.cmpi ne, %8, %9 : vector<1x256xi32>
    %c0_i32_6 = arith.constant 0 : i32
    %11 = vector.broadcast %c0_i32_6 : i32 to vector<1x256xi32>
    %12 = arith.cmpi slt, %8, %11 : vector<1x256xi32>
    %c0_i32_7 = arith.constant 0 : i32
    %13 = arith.cmpi slt, %6, %c0_i32_7 : i32
    %14 = vector.broadcast %13 : i1 to vector<1x256xi1>
    %15 = vector.broadcast %14 : vector<1x256xi1> to vector<1x256xi1>
    %16 = arith.xori %12, %15 : vector<1x256xi1>
    %17 = arith.andi %16, %10 : vector<1x256xi1>
    %18 = vector.broadcast %6 : i32 to vector<1x256xi32>
    %19 = arith.addi %8, %18 : vector<1x256xi32>
    %20 = arith.select %17, %19, %8 : vector<1x256xi1>, vector<1x256xi32>
    %c1_i32_8 = arith.constant 1 : i32
    %21 = vector.broadcast %c1_i32_8 : i32 to vector<1x256xi32>
    %22 = arith.cmpi sge, %20, %21 : vector<1x256xi32>
    %23 = arith.extui %22 : vector<1x256xi1> to vector<1x256xi32>
    %24 = arith.sitofp %23 : vector<1x256xi32> to vector<1x256xf32>
    %c14_i32 = arith.constant 14 : i32
    %25 = vector.broadcast %c14_i32 : i32 to vector<1x256xi32>
    %26 = arith.cmpi sle, %20, %25 : vector<1x256xi32>
    %27 = arith.extui %26 : vector<1x256xi1> to vector<1x256xi32>
    %28 = arith.sitofp %27 : vector<1x256xi32> to vector<1x256xf32>
    %cst = arith.constant 0.000000e+00 : f32
    %29 = vector.broadcast %cst : f32 to vector<4x256xf32>
    %30 = arith.cmpf ogt, %1, %29 : vector<4x256xf32>
    %c0_9 = arith.constant 0 : index
    %c0_10 = arith.constant 0 : index
    %31 = vector.load %arg3[%c0_9, %c0_10] : memref<4x1xf32, #tpu.memory_space<vmem>>, vector<4x1xf32>
    %32 = vector.broadcast %31 : vector<4x1xf32> to vector<4x256xf32>
    %33 = arith.mulf %32, %1 : vector<4x256xf32>
    %34 = arith.select %30, %1, %33 : vector<4x256xi1>, vector<4x256xf32>
    %cst_11 = arith.constant dense<0.000000e+00> : vector<256xf32>
    %35 = vector.multi_reduction <add>, %3, %cst_11 [0] : vector<4x256xf32> to vector<256xf32>
    %36 = vector.shape_cast %35 : vector<256xf32> to vector<1x256xf32>
    %37 = arith.mulf %34, %3 : vector<4x256xf32>
    %38 = tpu.concatenate %37, %36 in 0 : vector<4x256xf32>, vector<1x256xf32> -> vector<5x256xf32>
    %cst_12 = arith.constant 0.000000e+00 : f32
    %39 = vector.broadcast %cst_12 : f32 to vector<9x256xf32>
    %cst_13 = arith.constant 0.000000e+00 : f32
    %40 = vector.broadcast %cst_13 : f32 to vector<5x17xf32>
    %41 = vector.extract_strided_slice %38 {offsets = [0, 0], sizes = [5, 239], strides = [1, 1]} : vector<5x256xf32> to vector<5x239xf32>
    %42 = tpu.concatenate %40, %41 in 1 : vector<5x17xf32>, vector<5x239xf32> -> vector<5x256xf32>
    %43 = vector.broadcast %24 : vector<1x256xf32> to vector<5x256xf32>
    %44 = arith.mulf %42, %43 : vector<5x256xf32>
    %cst_14 = arith.constant 0.000000e+00 : f32
    %45 = vector.broadcast %cst_14 : f32 to vector<5x16xf32>
    %46 = vector.extract_strided_slice %38 {offsets = [0, 0], sizes = [5, 240], strides = [1, 1]} : vector<5x256xf32> to vector<5x240xf32>
    %47 = tpu.concatenate %45, %46 in 1 : vector<5x16xf32>, vector<5x240xf32> -> vector<5x256xf32>
    %cst_15 = arith.constant 0.000000e+00 : f32
    %48 = vector.broadcast %cst_15 : f32 to vector<5x15xf32>
    %49 = vector.extract_strided_slice %38 {offsets = [0, 0], sizes = [5, 241], strides = [1, 1]} : vector<5x256xf32> to vector<5x241xf32>
    %50 = tpu.concatenate %48, %49 in 1 : vector<5x15xf32>, vector<5x241xf32> -> vector<5x256xf32>
    %51 = vector.broadcast %28 : vector<1x256xf32> to vector<5x256xf32>
    %52 = arith.mulf %50, %51 : vector<5x256xf32>
    %53 = tpu.concatenate %44, %47, %52 in 0 : vector<5x256xf32>, vector<5x256xf32>, vector<5x256xf32> -> vector<15x256xf32>
    %c0_16 = arith.constant 0 : index
    %c0_17 = arith.constant 0 : index
    %c0_18 = arith.constant 0 : index
    %54 = vector.load %arg4[%c0_16, %c0_17, %c0_18] : memref<3x9x15xf32, #tpu.memory_space<vmem>>, vector<1x9x15xf32>
    %55 = vector.shape_cast %54 : vector<1x9x15xf32> to vector<9x15xf32>
    %cst_19 = arith.constant dense<0.000000e+00> : vector<9x256xf32>
    %56 = tpu.matmul %55, %53, %cst_19 {dimension_numbers = #tpu.dot_dimension_numbers<[1], [0], [0], [1], [0, 0, 1, 1], [], []>} : vector<9x15xf32>, vector<15x256xf32>, vector<9x256xf32> -> vector<9x256xf32>
    %57 = arith.addf %39, %56 : vector<9x256xf32>
    %cst_20 = arith.constant 0.000000e+00 : f32
    %58 = vector.broadcast %cst_20 : f32 to vector<5x1xf32>
    %59 = vector.extract_strided_slice %38 {offsets = [0, 0], sizes = [5, 255], strides = [1, 1]} : vector<5x256xf32> to vector<5x255xf32>
    %60 = tpu.concatenate %58, %59 in 1 : vector<5x1xf32>, vector<5x255xf32> -> vector<5x256xf32>
    %61 = vector.broadcast %24 : vector<1x256xf32> to vector<5x256xf32>
    %62 = arith.mulf %60, %61 : vector<5x256xf32>
    %cst_21 = arith.constant 0.000000e+00 : f32
    %63 = vector.broadcast %cst_21 : f32 to vector<5x1xf32>
    %64 = vector.extract_strided_slice %38 {offsets = [0, 1], sizes = [5, 255], strides = [1, 1]} : vector<5x256xf32> to vector<5x255xf32>
    %65 = tpu.concatenate %64, %63 in 1 : vector<5x255xf32>, vector<5x1xf32> -> vector<5x256xf32>
    %66 = vector.broadcast %28 : vector<1x256xf32> to vector<5x256xf32>
    %67 = arith.mulf %65, %66 : vector<5x256xf32>
    %68 = tpu.concatenate %62, %38, %67 in 0 : vector<5x256xf32>, vector<5x256xf32>, vector<5x256xf32> -> vector<15x256xf32>
    %c1 = arith.constant 1 : index
    %c0_22 = arith.constant 0 : index
    %c0_23 = arith.constant 0 : index
    %69 = vector.load %arg4[%c1, %c0_22, %c0_23] : memref<3x9x15xf32, #tpu.memory_space<vmem>>, vector<1x9x15xf32>
    %70 = vector.shape_cast %69 : vector<1x9x15xf32> to vector<9x15xf32>
    %cst_24 = arith.constant dense<0.000000e+00> : vector<9x256xf32>
    %71 = tpu.matmul %70, %68, %cst_24 {dimension_numbers = #tpu.dot_dimension_numbers<[1], [0], [0], [1], [0, 0, 1, 1], [], []>} : vector<9x15xf32>, vector<15x256xf32>, vector<9x256xf32> -> vector<9x256xf32>
    %72 = arith.addf %57, %71 : vector<9x256xf32>
    %cst_25 = arith.constant 0.000000e+00 : f32
    %73 = vector.broadcast %cst_25 : f32 to vector<5x15xf32>
    %74 = vector.extract_strided_slice %38 {offsets = [0, 15], sizes = [5, 241], strides = [1, 1]} : vector<5x256xf32> to vector<5x241xf32>
    %75 = tpu.concatenate %74, %73 in 1 : vector<5x241xf32>, vector<5x15xf32> -> vector<5x256xf32>
    %76 = vector.broadcast %24 : vector<1x256xf32> to vector<5x256xf32>
    %77 = arith.mulf %75, %76 : vector<5x256xf32>
    %cst_26 = arith.constant 0.000000e+00 : f32
    %78 = vector.broadcast %cst_26 : f32 to vector<5x16xf32>
    %79 = vector.extract_strided_slice %38 {offsets = [0, 16], sizes = [5, 240], strides = [1, 1]} : vector<5x256xf32> to vector<5x240xf32>
    %80 = tpu.concatenate %79, %78 in 1 : vector<5x240xf32>, vector<5x16xf32> -> vector<5x256xf32>
    %cst_27 = arith.constant 0.000000e+00 : f32
    %81 = vector.broadcast %cst_27 : f32 to vector<5x17xf32>
    %82 = vector.extract_strided_slice %38 {offsets = [0, 17], sizes = [5, 239], strides = [1, 1]} : vector<5x256xf32> to vector<5x239xf32>
    %83 = tpu.concatenate %82, %81 in 1 : vector<5x239xf32>, vector<5x17xf32> -> vector<5x256xf32>
    %84 = vector.broadcast %28 : vector<1x256xf32> to vector<5x256xf32>
    %85 = arith.mulf %83, %84 : vector<5x256xf32>
    %86 = tpu.concatenate %77, %80, %85 in 0 : vector<5x256xf32>, vector<5x256xf32>, vector<5x256xf32> -> vector<15x256xf32>
    %c2 = arith.constant 2 : index
    %c0_28 = arith.constant 0 : index
    %c0_29 = arith.constant 0 : index
    %87 = vector.load %arg4[%c2, %c0_28, %c0_29] : memref<3x9x15xf32, #tpu.memory_space<vmem>>, vector<1x9x15xf32>
    %88 = vector.shape_cast %87 : vector<1x9x15xf32> to vector<9x15xf32>
    %cst_30 = arith.constant dense<0.000000e+00> : vector<9x256xf32>
    %89 = tpu.matmul %88, %86, %cst_30 {dimension_numbers = #tpu.dot_dimension_numbers<[1], [0], [0], [1], [0, 0, 1, 1], [], []>} : vector<9x15xf32>, vector<15x256xf32>, vector<9x256xf32> -> vector<9x256xf32>
    %90 = arith.addf %72, %89 : vector<9x256xf32>
    %91 = vector.extract_strided_slice %90 {offsets = [8, 0], sizes = [1, 256], strides = [1, 1]} : vector<9x256xf32> to vector<1x256xf32>
    %cst_31 = arith.constant 0.000000e+00 : f32
    %cst_32 = arith.constant 1.000000e+00 : f32
    %92 = vector.broadcast %cst_31 : f32 to vector<1x256xf32>
    %93 = arith.maximumf %92, %91 : vector<1x256xf32>
    %94 = vector.broadcast %cst_32 : f32 to vector<1x256xf32>
    %95 = arith.minimumf %94, %93 : vector<1x256xf32>
    %cst_33 = arith.constant 9.99999993E-9 : f32
    %96 = vector.broadcast %cst_33 : f32 to vector<1x256xf32>
    %97 = arith.addf %91, %96 : vector<1x256xf32>
    %98 = tpu.reciprocal %97 {approx = true} : vector<1x256xf32> -> vector<1x256xf32>
    %99 = arith.mulf %97, %98 : vector<1x256xf32>
    %cst_34 = arith.constant 2.000000e+00 : f32
    %100 = vector.broadcast %cst_34 : f32 to vector<1x256xf32>
    %101 = arith.subf %100, %99 : vector<1x256xf32>
    %102 = arith.mulf %98, %101 : vector<1x256xf32>
    %cst_35 = arith.constant 3.600000e+01 : f32
    %103 = vector.broadcast %cst_35 : f32 to vector<1x256xf32>
    %104 = arith.mulf %103, %102 : vector<1x256xf32>
    %105 = arith.mulf %104, %95 : vector<1x256xf32>
    %106 = vector.extract_strided_slice %90 {offsets = [0, 0], sizes = [8, 256], strides = [1, 1]} : vector<9x256xf32> to vector<8x256xf32>
    %107 = vector.broadcast %105 : vector<1x256xf32> to vector<8x256xf32>
    %108 = arith.mulf %106, %107 : vector<8x256xf32>
    %c0_36 = arith.constant 0 : index
    %c0_37 = arith.constant 0 : index
    %109 = vector.load %arg5[%c0_36, %c0_37] : memref<8x1xf32, #tpu.memory_space<vmem>>, vector<8x1xf32>
    %110 = vector.broadcast %109 : vector<8x1xf32> to vector<8x256xf32>
    %111 = arith.addf %108, %110 : vector<8x256xf32>
    %112 = vector.broadcast %95 : vector<1x256xf32> to vector<8x256xf32>
    %113 = arith.mulf %111, %112 : vector<8x256xf32>
    %cst_38 = arith.constant 0.000000e+00 : f32
    %114 = vector.broadcast %cst_38 : f32 to vector<8x256xf32>
    %115 = arith.cmpf ogt, %113, %114 : vector<8x256xf32>
    %c0_39 = arith.constant 0 : index
    %c0_40 = arith.constant 0 : index
    %116 = vector.load %arg6[%c0_39, %c0_40] : memref<8x1xf32, #tpu.memory_space<vmem>>, vector<8x1xf32>
    %117 = vector.broadcast %116 : vector<8x1xf32> to vector<8x256xf32>
    %118 = arith.mulf %117, %113 : vector<8x256xf32>
    %119 = arith.select %115, %113, %118 : vector<8x256xi1>, vector<8x256xf32>
    %120 = vector.broadcast %95 : vector<1x256xf32> to vector<8x256xf32>
    %121 = arith.mulf %119, %120 : vector<8x256xf32>
    %122 = tpu.concatenate %121, %95 in 0 : vector<8x256xf32>, vector<1x256xf32> -> vector<9x256xf32>
    %cst_41 = arith.constant 0.000000e+00 : f32
    %123 = vector.broadcast %cst_41 : f32 to vector<7x256xf32>
    %cst_42 = arith.constant 0.000000e+00 : f32
    %124 = vector.broadcast %cst_42 : f32 to vector<9x17xf32>
    %125 = vector.extract_strided_slice %122 {offsets = [0, 0], sizes = [9, 239], strides = [1, 1]} : vector<9x256xf32> to vector<9x239xf32>
    %126 = tpu.concatenate %124, %125 in 1 : vector<9x17xf32>, vector<9x239xf32> -> vector<9x256xf32>
    %127 = vector.broadcast %24 : vector<1x256xf32> to vector<9x256xf32>
    %128 = arith.mulf %126, %127 : vector<9x256xf32>
    %cst_43 = arith.constant 0.000000e+00 : f32
    %129 = vector.broadcast %cst_43 : f32 to vector<9x16xf32>
    %130 = vector.extract_strided_slice %122 {offsets = [0, 0], sizes = [9, 240], strides = [1, 1]} : vector<9x256xf32> to vector<9x240xf32>
    %131 = tpu.concatenate %129, %130 in 1 : vector<9x16xf32>, vector<9x240xf32> -> vector<9x256xf32>
    %cst_44 = arith.constant 0.000000e+00 : f32
    %132 = vector.broadcast %cst_44 : f32 to vector<9x15xf32>
    %133 = vector.extract_strided_slice %122 {offsets = [0, 0], sizes = [9, 241], strides = [1, 1]} : vector<9x256xf32> to vector<9x241xf32>
    %134 = tpu.concatenate %132, %133 in 1 : vector<9x15xf32>, vector<9x241xf32> -> vector<9x256xf32>
    %135 = vector.broadcast %28 : vector<1x256xf32> to vector<9x256xf32>
    %136 = arith.mulf %134, %135 : vector<9x256xf32>
    %137 = tpu.concatenate %128, %131, %136 in 0 : vector<9x256xf32>, vector<9x256xf32>, vector<9x256xf32> -> vector<27x256xf32>
    %c0_45 = arith.constant 0 : index
    %c0_46 = arith.constant 0 : index
    %c0_47 = arith.constant 0 : index
    %138 = vector.load %arg7[%c0_45, %c0_46, %c0_47] : memref<3x7x27xf32, #tpu.memory_space<vmem>>, vector<1x7x27xf32>
    %139 = vector.shape_cast %138 : vector<1x7x27xf32> to vector<7x27xf32>
    %cst_48 = arith.constant dense<0.000000e+00> : vector<7x256xf32>
    %140 = tpu.matmul %139, %137, %cst_48 {dimension_numbers = #tpu.dot_dimension_numbers<[1], [0], [0], [1], [0, 0, 1, 1], [], []>} : vector<7x27xf32>, vector<27x256xf32>, vector<7x256xf32> -> vector<7x256xf32>
    %141 = arith.addf %123, %140 : vector<7x256xf32>
    %cst_49 = arith.constant 0.000000e+00 : f32
    %142 = vector.broadcast %cst_49 : f32 to vector<9x1xf32>
    %143 = vector.extract_strided_slice %122 {offsets = [0, 0], sizes = [9, 255], strides = [1, 1]} : vector<9x256xf32> to vector<9x255xf32>
    %144 = tpu.concatenate %142, %143 in 1 : vector<9x1xf32>, vector<9x255xf32> -> vector<9x256xf32>
    %145 = vector.broadcast %24 : vector<1x256xf32> to vector<9x256xf32>
    %146 = arith.mulf %144, %145 : vector<9x256xf32>
    %cst_50 = arith.constant 0.000000e+00 : f32
    %147 = vector.broadcast %cst_50 : f32 to vector<9x1xf32>
    %148 = vector.extract_strided_slice %122 {offsets = [0, 1], sizes = [9, 255], strides = [1, 1]} : vector<9x256xf32> to vector<9x255xf32>
    %149 = tpu.concatenate %148, %147 in 1 : vector<9x255xf32>, vector<9x1xf32> -> vector<9x256xf32>
    %150 = vector.broadcast %28 : vector<1x256xf32> to vector<9x256xf32>
    %151 = arith.mulf %149, %150 : vector<9x256xf32>
    %152 = tpu.concatenate %146, %122, %151 in 0 : vector<9x256xf32>, vector<9x256xf32>, vector<9x256xf32> -> vector<27x256xf32>
    %c1_51 = arith.constant 1 : index
    %c0_52 = arith.constant 0 : index
    %c0_53 = arith.constant 0 : index
    %153 = vector.load %arg7[%c1_51, %c0_52, %c0_53] : memref<3x7x27xf32, #tpu.memory_space<vmem>>, vector<1x7x27xf32>
    %154 = vector.shape_cast %153 : vector<1x7x27xf32> to vector<7x27xf32>
    %cst_54 = arith.constant dense<0.000000e+00> : vector<7x256xf32>
    %155 = tpu.matmul %154, %152, %cst_54 {dimension_numbers = #tpu.dot_dimension_numbers<[1], [0], [0], [1], [0, 0, 1, 1], [], []>} : vector<7x27xf32>, vector<27x256xf32>, vector<7x256xf32> -> vector<7x256xf32>
    %156 = arith.addf %141, %155 : vector<7x256xf32>
    %cst_55 = arith.constant 0.000000e+00 : f32
    %157 = vector.broadcast %cst_55 : f32 to vector<9x15xf32>
    %158 = vector.extract_strided_slice %122 {offsets = [0, 15], sizes = [9, 241], strides = [1, 1]} : vector<9x256xf32> to vector<9x241xf32>
    %159 = tpu.concatenate %158, %157 in 1 : vector<9x241xf32>, vector<9x15xf32> -> vector<9x256xf32>
    %160 = vector.broadcast %24 : vector<1x256xf32> to vector<9x256xf32>
    %161 = arith.mulf %159, %160 : vector<9x256xf32>
    %cst_56 = arith.constant 0.000000e+00 : f32
    %162 = vector.broadcast %cst_56 : f32 to vector<9x16xf32>
    %163 = vector.extract_strided_slice %122 {offsets = [0, 16], sizes = [9, 240], strides = [1, 1]} : vector<9x256xf32> to vector<9x240xf32>
    %164 = tpu.concatenate %163, %162 in 1 : vector<9x240xf32>, vector<9x16xf32> -> vector<9x256xf32>
    %cst_57 = arith.constant 0.000000e+00 : f32
    %165 = vector.broadcast %cst_57 : f32 to vector<9x17xf32>
    %166 = vector.extract_strided_slice %122 {offsets = [0, 17], sizes = [9, 239], strides = [1, 1]} : vector<9x256xf32> to vector<9x239xf32>
    %167 = tpu.concatenate %166, %165 in 1 : vector<9x239xf32>, vector<9x17xf32> -> vector<9x256xf32>
    %168 = vector.broadcast %28 : vector<1x256xf32> to vector<9x256xf32>
    %169 = arith.mulf %167, %168 : vector<9x256xf32>
    %170 = tpu.concatenate %161, %164, %169 in 0 : vector<9x256xf32>, vector<9x256xf32>, vector<9x256xf32> -> vector<27x256xf32>
    %c2_58 = arith.constant 2 : index
    %c0_59 = arith.constant 0 : index
    %c0_60 = arith.constant 0 : index
    %171 = vector.load %arg7[%c2_58, %c0_59, %c0_60] : memref<3x7x27xf32, #tpu.memory_space<vmem>>, vector<1x7x27xf32>
    %172 = vector.shape_cast %171 : vector<1x7x27xf32> to vector<7x27xf32>
    %cst_61 = arith.constant dense<0.000000e+00> : vector<7x256xf32>
    %173 = tpu.matmul %172, %170, %cst_61 {dimension_numbers = #tpu.dot_dimension_numbers<[1], [0], [0], [1], [0, 0, 1, 1], [], []>} : vector<7x27xf32>, vector<27x256xf32>, vector<7x256xf32> -> vector<7x256xf32>
    %174 = arith.addf %156, %173 : vector<7x256xf32>
    %175 = vector.extract_strided_slice %174 {offsets = [6, 0], sizes = [1, 256], strides = [1, 1]} : vector<7x256xf32> to vector<1x256xf32>
    %cst_62 = arith.constant 0.000000e+00 : f32
    %cst_63 = arith.constant 1.000000e+00 : f32
    %176 = vector.broadcast %cst_62 : f32 to vector<1x256xf32>
    %177 = arith.maximumf %176, %175 : vector<1x256xf32>
    %178 = vector.broadcast %cst_63 : f32 to vector<1x256xf32>
    %179 = arith.minimumf %178, %177 : vector<1x256xf32>
    %cst_64 = arith.constant 9.99999993E-9 : f32
    %180 = vector.broadcast %cst_64 : f32 to vector<1x256xf32>
    %181 = arith.addf %175, %180 : vector<1x256xf32>
    %182 = tpu.reciprocal %181 {approx = true} : vector<1x256xf32> -> vector<1x256xf32>
    %183 = arith.mulf %181, %182 : vector<1x256xf32>
    %cst_65 = arith.constant 2.000000e+00 : f32
    %184 = vector.broadcast %cst_65 : f32 to vector<1x256xf32>
    %185 = arith.subf %184, %183 : vector<1x256xf32>
    %186 = arith.mulf %182, %185 : vector<1x256xf32>
    %cst_66 = arith.constant 7.200000e+01 : f32
    %187 = vector.broadcast %cst_66 : f32 to vector<1x256xf32>
    %188 = arith.mulf %187, %186 : vector<1x256xf32>
    %189 = arith.mulf %188, %179 : vector<1x256xf32>
    %190 = vector.extract_strided_slice %174 {offsets = [0, 0], sizes = [6, 256], strides = [1, 1]} : vector<7x256xf32> to vector<6x256xf32>
    %191 = vector.broadcast %189 : vector<1x256xf32> to vector<6x256xf32>
    %192 = arith.mulf %190, %191 : vector<6x256xf32>
    %c0_67 = arith.constant 0 : index
    %c0_68 = arith.constant 0 : index
    %193 = vector.load %arg8[%c0_67, %c0_68] : memref<6x1xf32, #tpu.memory_space<vmem>>, vector<6x1xf32>
    %194 = vector.broadcast %193 : vector<6x1xf32> to vector<6x256xf32>
    %195 = arith.addf %192, %194 : vector<6x256xf32>
    %196 = vector.broadcast %179 : vector<1x256xf32> to vector<6x256xf32>
    %197 = arith.mulf %195, %196 : vector<6x256xf32>
    %c0_69 = arith.constant 0 : index
    %c0_70 = arith.constant 0 : index
    %198 = vector.load %arg9[%c0_69, %c0_70] : memref<6x4xf32, #tpu.memory_space<vmem>>, vector<6x4xf32>
    %cst_71 = arith.constant dense<0.000000e+00> : vector<6x256xf32>
    %199 = tpu.matmul %198, %1, %cst_71 {dimension_numbers = #tpu.dot_dimension_numbers<[1], [0], [0], [1], [0, 0, 1, 1], [], []>} : vector<6x4xf32>, vector<4x256xf32>, vector<6x256xf32> -> vector<6x256xf32>
    %c0_72 = arith.constant 0 : index
    %c0_73 = arith.constant 0 : index
    %200 = vector.load %arg10[%c0_72, %c0_73] : memref<6x1xf32, #tpu.memory_space<vmem>>, vector<6x1xf32>
    %201 = vector.broadcast %200 : vector<6x1xf32> to vector<6x256xf32>
    %202 = arith.addf %199, %201 : vector<6x256xf32>
    %203 = arith.addf %197, %202 : vector<6x256xf32>
    %c0_74 = arith.constant 0 : index
    %c0_75 = arith.constant 0 : index
    %c0_76 = arith.constant 0 : index
    %204 = vector.load %arg11[%c0_74, %c0_75, %c0_76] : memref<1x6x256xf32, #tpu.memory_space<vmem>>, vector<1x6x256xf32>
    %205 = vector.shape_cast %204 : vector<1x6x256xf32> to vector<6x256xf32>
    %206 = vector.shape_cast %203 : vector<6x256xf32> to vector<1x6x256xf32>
    tpu.vector_store %arg11[%c0_74, %c0_75, %c0_76], %206 {strides = array<i32>} : memref<1x6x256xf32, #tpu.memory_space<vmem>>, vector<1x6x256xf32>,
    %c0_77 = arith.constant 0 : index
    %c0_78 = arith.constant 0 : index
    %c0_79 = arith.constant 0 : index
    %207 = vector.load %arg12[%c0_77, %c0_78, %c0_79] : memref<1x1x256xf32, #tpu.memory_space<vmem>>, vector<1x1x256xf32>
    %208 = vector.shape_cast %207 : vector<1x1x256xf32> to vector<1x256xf32>
    %209 = vector.shape_cast %179 : vector<1x256xf32> to vector<1x1x256xf32>
    tpu.vector_store %arg12[%c0_77, %c0_78, %c0_79], %209 {strides = array<i32>} : memref<1x1x256xf32, #tpu.memory_space<vmem>>, vector<1x1x256xf32>,
    return
  }
  func.func @transform_0(%arg0: i32) -> (i32, i32, i32) {
    %c0_i32 = arith.constant 0 : i32
    %c0_i32_0 = arith.constant 0 : i32
    %c0_i32_1 = arith.constant 0 : i32
    return %arg0, %c0_i32, %c0_i32_0 : i32, i32, i32
  }
  func.func @transform_1(%arg0: i32) -> (i32, i32, i32) {
    %c0_i32 = arith.constant 0 : i32
    %c0_i32_0 = arith.constant 0 : i32
    %c0_i32_1 = arith.constant 0 : i32
    return %arg0, %c0_i32, %c0_i32_0 : i32, i32, i32
  }
  func.func @transform_2(%arg0: i32) -> (i32, i32) {
    %c0_i32 = arith.constant 0 : i32
    %c0_i32_0 = arith.constant 0 : i32
    %c0_i32_1 = arith.constant 0 : i32
    return %c0_i32, %c0_i32_0 : i32, i32
  }
  func.func @transform_3(%arg0: i32) -> (i32, i32, i32) {
    %c0_i32 = arith.constant 0 : i32
    %c0_i32_0 = arith.constant 0 : i32
    %c0_i32_1 = arith.constant 0 : i32
    %c0_i32_2 = arith.constant 0 : i32
    return %c0_i32, %c0_i32_0, %c0_i32_1 : i32, i32, i32
  }
  func.func @transform_4(%arg0: i32) -> (i32, i32) {
    %c0_i32 = arith.constant 0 : i32
    %c0_i32_0 = arith.constant 0 : i32
    %c0_i32_1 = arith.constant 0 : i32
    return %c0_i32, %c0_i32_0 : i32, i32
  }
  func.func @transform_5(%arg0: i32) -> (i32, i32) {
    %c0_i32 = arith.constant 0 : i32
    %c0_i32_0 = arith.constant 0 : i32
    %c0_i32_1 = arith.constant 0 : i32
    return %c0_i32, %c0_i32_0 : i32, i32
  }
  func.func @transform_6(%arg0: i32) -> (i32, i32, i32) {
    %c0_i32 = arith.constant 0 : i32
    %c0_i32_0 = arith.constant 0 : i32
    %c0_i32_1 = arith.constant 0 : i32
    %c0_i32_2 = arith.constant 0 : i32
    return %c0_i32, %c0_i32_0, %c0_i32_1 : i32, i32, i32
  }
  func.func @transform_7(%arg0: i32) -> (i32, i32) {
    %c0_i32 = arith.constant 0 : i32
    %c0_i32_0 = arith.constant 0 : i32
    %c0_i32_1 = arith.constant 0 : i32
    return %c0_i32, %c0_i32_0 : i32, i32
  }
  func.func @transform_8(%arg0: i32) -> (i32, i32) {
    %c0_i32 = arith.constant 0 : i32
    %c0_i32_0 = arith.constant 0 : i32
    %c0_i32_1 = arith.constant 0 : i32
    return %c0_i32, %c0_i32_0 : i32, i32
  }
  func.func @transform_9(%arg0: i32) -> (i32, i32) {
    %c0_i32 = arith.constant 0 : i32
    %c0_i32_0 = arith.constant 0 : i32
    %c0_i32_1 = arith.constant 0 : i32
    return %c0_i32, %c0_i32_0 : i32, i32
  }
  func.func @transform_10(%arg0: i32) -> (i32, i32, i32) {
    %c0_i32 = arith.constant 0 : i32
    %c0_i32_0 = arith.constant 0 : i32
    %c0_i32_1 = arith.constant 0 : i32
    return %arg0, %c0_i32, %c0_i32_0 : i32, i32, i32
  }
  func.func @transform_11(%arg0: i32) -> (i32, i32, i32) {
    %c0_i32 = arith.constant 0 : i32
    %c0_i32_0 = arith.constant 0 : i32
    %c0_i32_1 = arith.constant 0 : i32
    return %arg0, %c0_i32, %c0_i32_0 : i32, i32, i32
  }
}

</mosaic_0001>

<llo_original>
// kernel: basic_forward.1
$region0: #{basic_forward.1}
  #allocation0 [shape = 'u32[]', space=smem, size = 0x4, offset = 0x4, fixed_abs, tag = 'smem constant byte address 0x4 - core index']
  #allocation1 [shape = 'u32[144,128]{1,0:T(1,128)}', space=vmem, size = 0x12000, scoped, tag = 'internal scratch']
  %s0 = inlined_call_operand.vmem [shape: f32[2,4,256], index: 0, kind: input, shape index: {}]
  %s1 = inlined_call_operand.vmem [shape: f32[2,4,256], index: 1, kind: input, shape index: {}]
  %s2 = inlined_call_operand.vmem [shape: f32[4,1], index: 2, kind: input, shape index: {}]
  %s3 = inlined_call_operand.vmem [shape: f32[3,9,15], index: 3, kind: input, shape index: {}]
  %s4 = inlined_call_operand.vmem [shape: f32[8,1], index: 4, kind: input, shape index: {}]
  %s5 = inlined_call_operand.vmem [shape: f32[8,1], index: 5, kind: input, shape index: {}]
  %s6 = inlined_call_operand.vmem [shape: f32[3,7,27], index: 6, kind: input, shape index: {}]
  %s7 = inlined_call_operand.vmem [shape: f32[6,1], index: 7, kind: input, shape index: {}]
  %s8 = inlined_call_operand.vmem [shape: f32[6,4], index: 8, kind: input, shape index: {}]
  %s9 = inlined_call_operand.vmem [shape: f32[6,1], index: 9, kind: input, shape index: {}]
  %s10 = inlined_call_operand.vmem [shape: f32[2,6,256], index: 10, kind: output, shape index: {0}]
  %s11 = inlined_call_operand.vmem [shape: f32[2,1,256], index: 11, kind: output, shape index: {1}]
  %12 = xla_tuple %s10, %s11
  %s13 = sld [smem:[#allocation0]]
  $region81: #{basic_forward.1} parent=0
    _
  %s15 = ssub.s32 1, %s13
  %s16 = scalar_select 0, %s15, %s13
  loop: start=0, step=1, limit=4
  $region2: #{basic_forward.1} parent=0 // loop_pre_header
    _
  $region3: #{basic_forward.1} parent=0 // loop_header
    %s18 = sphi 0, %s22
    %p19 = scmp.ge.s32.totalorder %s18, 4
    %s28 = sphi 0, %s30
    %s31 = sphi 0, %s28
    %s32 = sphi 0, %s31
    %s48 = sphi 0, %s32
    %s54 = sphi 0, %s56
    %s57 = sphi 0, %s54
    %s58 = sphi 0, %s57
    %s74 = sphi 0, %s58
    %s78 = sphi 0, %s78
    %s80 = sphi 0, %s78
    %s81 = sphi 0, %s80
    %s95 = sphi 0, %s81
    %s99 = sphi 0, %s99
    %s101 = sphi 0, %s99
    %s102 = sphi 0, %s101
    %s116 = sphi 0, %s102
    %s120 = sphi 0, %s120
    %s122 = sphi 0, %s120
    %s123 = sphi 0, %s122
    %s137 = sphi 0, %s123
    %s141 = sphi 0, %s141
    %s143 = sphi 0, %s141
    %s144 = sphi 0, %s143
    %s158 = sphi 0, %s144
    %s162 = sphi 0, %s162
    %s164 = sphi 0, %s162
    %s165 = sphi 0, %s164
    %s179 = sphi 0, %s165
    %s183 = sphi 0, %s183
    %s185 = sphi 0, %s183
    %s186 = sphi 0, %s185
    %s200 = sphi 0, %s186
    %s204 = sphi 0, %s204
    %s206 = sphi 0, %s204
    %s207 = sphi 0, %s206
    %s221 = sphi 0, %s207
    %s225 = sphi 0, %s225
    %s227 = sphi 0, %s225
    %s228 = sphi 0, %s227
    %s242 = sphi 0, %s228
    %s248 = sphi 0, %s250
    %s251 = sphi 0, %s248
    %s252 = sphi 0, %s251
    %s268 = sphi 0, %s252
    %s274 = sphi 0, %s276
    %s277 = sphi 0, %s274
    %s278 = sphi 0, %s277
    %s294 = sphi 0, %s278
  $region4: #{basic_forward.1} parent=0 // loop_header_branch
    %21 = sbr.rel (%p19) target = $region8
  $region5: #{basic_forward.1} parent=0 // loop_body
    %s23 = ssub.s32 %s18, 1
    %s24 = ssub.s32 %s18, 2
    %s25 = sadd.s32 %s18, 1
    %s26 = ssub.s32 %s18, %s25
    %p27 = scmp.eq.s32.totalorder %s26, 0
    %s29 = sadd.s32 %s28, 1
    %s30 = scalar_select %p27, %s28, %s29
    %p33 = pneg %p27
    %p34 = scmp.eq.s32.totalorder %s18, 1
    %p35 = por %p33, %p34
    %p36 = scmp.ne.s32.totalorder %s28, %s31
    %p37 = scmp.eq.s32.totalorder %s18, 0
    %p38 = por %p36, %p37
    %p39 = scmp.ne.s32.totalorder %s28, %s31
    %p40 = scmp.eq.s32.totalorder %s23, 1
    %p41 = por %p39, %p40
    %p42 = scmp.ne.s32.totalorder %s31, %s32
    %p43 = scmp.eq.s32.totalorder %s23, 0
    %p44 = por %p42, %p43
    %p45 = scmp.ne.s32.totalorder %s31, %s32
    %p46 = scmp.eq.s32.totalorder %s24, 1
    %p47 = por %p45, %p46
    %p49 = scmp.ne.s32.totalorder %s32, %s48
    %p50 = scmp.eq.s32.totalorder %s24, 0
    %p51 = por %p49, %p50
    %s52 = ssub.s32 %s18, %s25
    %p53 = scmp.eq.s32.totalorder %s52, 0
    %s55 = sadd.s32 %s54, 1
    %s56 = scalar_select %p53, %s54, %s55
    %p59 = pneg %p53
    %p60 = scmp.eq.s32.totalorder %s18, 1
    %p61 = por %p59, %p60
    %p62 = scmp.ne.s32.totalorder %s54, %s57
    %p63 = scmp.eq.s32.totalorder %s18, 0
    %p64 = por %p62, %p63
    %p65 = scmp.ne.s32.totalorder %s54, %s57
    %p66 = scmp.eq.s32.totalorder %s23, 1
    %p67 = por %p65, %p66
    %p68 = scmp.ne.s32.totalorder %s57, %s58
    %p69 = scmp.eq.s32.totalorder %s23, 0
    %p70 = por %p68, %p69
    %p71 = scmp.ne.s32.totalorder %s57, %s58
    %p72 = scmp.eq.s32.totalorder %s24, 1
    %p73 = por %p71, %p72
    %p75 = scmp.ne.s32.totalorder %s58, %s74
    %p76 = scmp.eq.s32.totalorder %s24, 0
    %p77 = por %p75, %p76
    %s79 = sadd.s32 %s78, 1
    %p82 = scmp.eq.s32.totalorder %s18, 1
    %p83 = scmp.ne.s32.totalorder %s78, %s80
    %p84 = scmp.eq.s32.totalorder %s18, 0
    %p85 = por %p83, %p84
    %p86 = scmp.ne.s32.totalorder %s78, %s80
    %p87 = scmp.eq.s32.totalorder %s23, 1
    %p88 = por %p86, %p87
    %p89 = scmp.ne.s32.totalorder %s80, %s81
    %p90 = scmp.eq.s32.totalorder %s23, 0
    %p91 = por %p89, %p90
    %p92 = scmp.ne.s32.totalorder %s80, %s81
    %p93 = scmp.eq.s32.totalorder %s24, 1
    %p94 = por %p92, %p93
    %p96 = scmp.ne.s32.totalorder %s81, %s95
    %p97 = scmp.eq.s32.totalorder %s24, 0
    %p98 = por %p96, %p97
    %s100 = sadd.s32 %s99, 1
    %p103 = scmp.eq.s32.totalorder %s18, 1
    %p104 = scmp.ne.s32.totalorder %s99, %s101
    %p105 = scmp.eq.s32.totalorder %s18, 0
    %p106 = por %p104, %p105
    %p107 = scmp.ne.s32.totalorder %s99, %s101
    %p108 = scmp.eq.s32.totalorder %s23, 1
    %p109 = por %p107, %p108
    %p110 = scmp.ne.s32.totalorder %s101, %s102
    %p111 = scmp.eq.s32.totalorder %s23, 0
    %p112 = por %p110, %p111
    %p113 = scmp.ne.s32.totalorder %s101, %s102
    %p114 = scmp.eq.s32.totalorder %s24, 1
    %p115 = por %p113, %p114
    %p117 = scmp.ne.s32.totalorder %s102, %s116
    %p118 = scmp.eq.s32.totalorder %s24, 0
    %p119 = por %p117, %p118
    %s121 = sadd.s32 %s120, 1
    %p124 = scmp.eq.s32.totalorder %s18, 1
    %p125 = scmp.ne.s32.totalorder %s120, %s122
    %p126 = scmp.eq.s32.totalorder %s18, 0
    %p127 = por %p125, %p126
    %p128 = scmp.ne.s32.totalorder %s120, %s122
    %p129 = scmp.eq.s32.totalorder %s23, 1
    %p130 = por %p128, %p129
    %p131 = scmp.ne.s32.totalorder %s122, %s123
    %p132 = scmp.eq.s32.totalorder %s23, 0
    %p133 = por %p131, %p132
    %p134 = scmp.ne.s32.totalorder %s122, %s123
    %p135 = scmp.eq.s32.totalorder %s24, 1
    %p136 = por %p134, %p135
    %p138 = scmp.ne.s32.totalorder %s123, %s137
    %p139 = scmp.eq.s32.totalorder %s24, 0
    %p140 = por %p138, %p139
    %s142 = sadd.s32 %s141, 1
    %p145 = scmp.eq.s32.totalorder %s18, 1
    %p146 = scmp.ne.s32.totalorder %s141, %s143
    %p147 = scmp.eq.s32.totalorder %s18, 0
    %p148 = por %p146, %p147
    %p149 = scmp.ne.s32.totalorder %s141, %s143
    %p150 = scmp.eq.s32.totalorder %s23, 1
    %p151 = por %p149, %p150
    %p152 = scmp.ne.s32.totalorder %s143, %s144
    %p153 = scmp.eq.s32.totalorder %s23, 0
    %p154 = por %p152, %p153
    %p155 = scmp.ne.s32.totalorder %s143, %s144
    %p156 = scmp.eq.s32.totalorder %s24, 1
    %p157 = por %p155, %p156
    %p159 = scmp.ne.s32.totalorder %s144, %s158
    %p160 = scmp.eq.s32.totalorder %s24, 0
    %p161 = por %p159, %p160
    %s163 = sadd.s32 %s162, 1
    %p166 = scmp.eq.s32.totalorder %s18, 1
    %p167 = scmp.ne.s32.totalorder %s162, %s164
    %p168 = scmp.eq.s32.totalorder %s18, 0
    %p169 = por %p167, %p168
    %p170 = scmp.ne.s32.totalorder %s162, %s164
    %p171 = scmp.eq.s32.totalorder %s23, 1
    %p172 = por %p170, %p171
    %p173 = scmp.ne.s32.totalorder %s164, %s165
    %p174 = scmp.eq.s32.totalorder %s23, 0
    %p175 = por %p173, %p174
    %p176 = scmp.ne.s32.totalorder %s164, %s165
    %p177 = scmp.eq.s32.totalorder %s24, 1
    %p178 = por %p176, %p177
    %p180 = scmp.ne.s32.totalorder %s165, %s179
    %p181 = scmp.eq.s32.totalorder %s24, 0
    %p182 = por %p180, %p181
    %s184 = sadd.s32 %s183, 1
    %p187 = scmp.eq.s32.totalorder %s18, 1
    %p188 = scmp.ne.s32.totalorder %s183, %s185
    %p189 = scmp.eq.s32.totalorder %s18, 0
    %p190 = por %p188, %p189
    %p191 = scmp.ne.s32.totalorder %s183, %s185
    %p192 = scmp.eq.s32.totalorder %s23, 1
    %p193 = por %p191, %p192
    %p194 = scmp.ne.s32.totalorder %s185, %s186
    %p195 = scmp.eq.s32.totalorder %s23, 0
    %p196 = por %p194, %p195
    %p197 = scmp.ne.s32.totalorder %s185, %s186
    %p198 = scmp.eq.s32.totalorder %s24, 1
    %p199 = por %p197, %p198
    %p201 = scmp.ne.s32.totalorder %s186, %s200
    %p202 = scmp.eq.s32.totalorder %s24, 0
    %p203 = por %p201, %p202
    %s205 = sadd.s32 %s204, 1
    %p208 = scmp.eq.s32.totalorder %s18, 1
    %p209 = scmp.ne.s32.totalorder %s204, %s206
    %p210 = scmp.eq.s32.totalorder %s18, 0
    %p211 = por %p209, %p210
    %p212 = scmp.ne.s32.totalorder %s204, %s206
    %p213 = scmp.eq.s32.totalorder %s23, 1
    %p214 = por %p212, %p213
    %p215 = scmp.ne.s32.totalorder %s206, %s207
    %p216 = scmp.eq.s32.totalorder %s23, 0
    %p217 = por %p215, %p216
    %p218 = scmp.ne.s32.totalorder %s206, %s207
    %p219 = scmp.eq.s32.totalorder %s24, 1
    %p220 = por %p218, %p219
    %p222 = scmp.ne.s32.totalorder %s207, %s221
    %p223 = scmp.eq.s32.totalorder %s24, 0
    %p224 = por %p222, %p223
    %s226 = sadd.s32 %s225, 1
    %p229 = scmp.eq.s32.totalorder %s18, 1
    %p230 = scmp.ne.s32.totalorder %s225, %s227
    %p231 = scmp.eq.s32.totalorder %s18, 0
    %p232 = por %p230, %p231
    %p233 = scmp.ne.s32.totalorder %s225, %s227
    %p234 = scmp.eq.s32.totalorder %s23, 1
    %p235 = por %p233, %p234
    %p236 = scmp.ne.s32.totalorder %s227, %s228
    %p237 = scmp.eq.s32.totalorder %s23, 0
    %p238 = por %p236, %p237
    %p239 = scmp.ne.s32.totalorder %s227, %s228
    %p240 = scmp.eq.s32.totalorder %s24, 1
    %p241 = por %p239, %p240
    %p243 = scmp.ne.s32.totalorder %s228, %s242
    %p244 = scmp.eq.s32.totalorder %s24, 0
    %p245 = por %p243, %p244
    %s246 = ssub.s32 %s18, %s25
    %p247 = scmp.eq.s32.totalorder %s246, 0
    %s249 = sadd.s32 %s248, 1
    %s250 = scalar_select %p247, %s248, %s249
    %p253 = pneg %p247
    %p254 = scmp.eq.s32.totalorder %s18, 1
    %p255 = por %p253, %p254
    %p256 = scmp.ne.s32.totalorder %s248, %s251
    %p257 = scmp.eq.s32.totalorder %s18, 0
    %p258 = por %p256, %p257
    %p259 = scmp.ne.s32.totalorder %s248, %s251
    %p260 = scmp.eq.s32.totalorder %s23, 1
    %p261 = por %p259, %p260
    %p262 = scmp.ne.s32.totalorder %s251, %s252
    %p263 = scmp.eq.s32.totalorder %s23, 0
    %p264 = por %p262, %p263
    %p265 = scmp.ne.s32.totalorder %s251, %s252
    %p266 = scmp.eq.s32.totalorder %s24, 1
    %p267 = por %p265, %p266
    %p269 = scmp.ne.s32.totalorder %s252, %s268
    %p270 = scmp.eq.s32.totalorder %s24, 0
    %p271 = por %p269, %p270
    %s272 = ssub.s32 %s18, %s25
    %p273 = scmp.eq.s32.totalorder %s272, 0
    %s275 = sadd.s32 %s274, 1
    %s276 = scalar_select %p273, %s274, %s275
    %p279 = pneg %p273
    %p280 = scmp.eq.s32.totalorder %s18, 1
    %p281 = por %p279, %p280
    %p282 = scmp.ne.s32.totalorder %s274, %s277
    %p283 = scmp.eq.s32.totalorder %s18, 0
    %p284 = por %p282, %p283
    %p285 = scmp.ne.s32.totalorder %s274, %s277
    %p286 = scmp.eq.s32.totalorder %s23, 1
    %p287 = por %p285, %p286
    %p288 = scmp.ne.s32.totalorder %s277, %s278
    %p289 = scmp.eq.s32.totalorder %s23, 0
    %p290 = por %p288, %p289
    %p291 = scmp.ne.s32.totalorder %s277, %s278
    %p292 = scmp.eq.s32.totalorder %s24, 1
    %p293 = por %p291, %p292
    %p295 = scmp.ne.s32.totalorder %s278, %s294
    %p296 = scmp.eq.s32.totalorder %s24, 0
    %p297 = por %p295, %p296
    %p298 = scmp.le.s32.totalorder 1, %s18
    %p299 = scmp.lt.s32.totalorder %s18, 3
    %p300 = pnand %p298, %p299
    %p301 = pneg %p300
    // Predicated region
    $region9: #{basic_forward.1} parent=5 // pred_check
      _
    $region10: #{basic_forward.1} parent=5 // pred_check_branch
      %303 = sbr.rel (%p300) target = $region12
    $region11: #{basic_forward.1} parent=5 // pred_region
      %s304 = ssub.s32 %s18, 1
      // Predicated region
      $region13: #{basic_forward.1} parent=11 // pred_check
        %p305 = pneg %p91
      $region14: #{basic_forward.1} parent=11 // pred_check_branch
        %307 = sbr.rel (%p305) target = $region16
      $region15: #{basic_forward.1} parent=11 // pred_region
        _
      $region16: #{basic_forward.1} parent=11 // pred_fallthru
        _
      // Predicated region
      $region17: #{basic_forward.1} parent=11 // pred_check
        %p308 = pneg %p112
      $region18: #{basic_forward.1} parent=11 // pred_check_branch
        %310 = sbr.rel (%p308) target = $region20
      $region19: #{basic_forward.1} parent=11 // pred_region
        _
      $region20: #{basic_forward.1} parent=11 // pred_fallthru
        _
      // Predicated region
      $region21: #{basic_forward.1} parent=11 // pred_check
        %p311 = pneg %p133
      $region22: #{basic_forward.1} parent=11 // pred_check_branch
        %313 = sbr.rel (%p311) target = $region24
      $region23: #{basic_forward.1} parent=11 // pred_region
        _
      $region24: #{basic_forward.1} parent=11 // pred_fallthru
        _
      // Predicated region
      $region25: #{basic_forward.1} parent=11 // pred_check
        %p314 = pneg %p154
      $region26: #{basic_forward.1} parent=11 // pred_check_branch
        %316 = sbr.rel (%p314) target = $region28
      $region27: #{basic_forward.1} parent=11 // pred_region
        _
      $region28: #{basic_forward.1} parent=11 // pred_fallthru
        _
      // Predicated region
      $region29: #{basic_forward.1} parent=11 // pred_check
        %p317 = pneg %p175
      $region30: #{basic_forward.1} parent=11 // pred_check_branch
        %319 = sbr.rel (%p317) target = $region32
      $region31: #{basic_forward.1} parent=11 // pred_region
        _
      $region32: #{basic_forward.1} parent=11 // pred_fallthru
        _
      // Predicated region
      $region33: #{basic_forward.1} parent=11 // pred_check
        %p320 = pneg %p196
      $region34: #{basic_forward.1} parent=11 // pred_check_branch
        %322 = sbr.rel (%p320) target = $region36
      $region35: #{basic_forward.1} parent=11 // pred_region
        _
      $region36: #{basic_forward.1} parent=11 // pred_fallthru
        _
      // Predicated region
      $region37: #{basic_forward.1} parent=11 // pred_check
        %p323 = pneg %p217
      $region38: #{basic_forward.1} parent=11 // pred_check_branch
        %325 = sbr.rel (%p323) target = $region40
      $region39: #{basic_forward.1} parent=11 // pred_region
        _
      $region40: #{basic_forward.1} parent=11 // pred_fallthru
        _
      // Predicated region
      $region41: #{basic_forward.1} parent=11 // pred_check
        %p326 = pneg %p238
      $region42: #{basic_forward.1} parent=11 // pred_check_branch
        %328 = sbr.rel (%p326) target = $region44
      $region43: #{basic_forward.1} parent=11 // pred_region
        _
      $region44: #{basic_forward.1} parent=11 // pred_fallthru
        _
    $region12: #{basic_forward.1} parent=5 // pred_fallthru
      _
    %p329 = scmp.lt.s32.totalorder %s18, 2
    // Predicated region
    $region45: #{basic_forward.1} parent=5 // pred_check
      %p330 = pneg %p329
    $region46: #{basic_forward.1} parent=5 // pred_check_branch
      %332 = sbr.rel (%p330) target = $region48
    $region47: #{basic_forward.1} parent=5 // pred_region
      // Predicated region
      $region49: #{basic_forward.1} parent=47 // pred_check
        %p333 = pneg %p38
      $region50: #{basic_forward.1} parent=47 // pred_check_branch
        %335 = sbr.rel (%p333) target = $region52
      $region51: #{basic_forward.1} parent=47 // pred_region
        %p336 = scmp.lt.s32.totalorder %s18, 1
        %s337 = scalar_select %p336, %s18, 1
        %s338 = smul.addr %s337, 2
        %s339 = smul.addr %s338, 4
        %s340 = scalar_lea.vmem %s0, %s339
      $region52: #{basic_forward.1} parent=47 // pred_fallthru
        _
      // Predicated region
      $region53: #{basic_forward.1} parent=47 // pred_check
        %p341 = pneg %p64
      $region54: #{basic_forward.1} parent=47 // pred_check_branch
        %343 = sbr.rel (%p341) target = $region56
      $region55: #{basic_forward.1} parent=47 // pred_region
        %p344 = scmp.lt.s32.totalorder %s18, 1
        %s345 = scalar_select %p344, %s18, 1
        %s346 = smul.addr %s345, 2
        %s347 = smul.addr %s346, 4
        %s348 = scalar_lea.vmem %s1, %s347
      $region56: #{basic_forward.1} parent=47 // pred_fallthru
        _
    $region48: #{basic_forward.1} parent=5 // pred_fallthru
      _
    %p349 = scmp.le.s32.totalorder 1, %s18
    %p350 = scmp.lt.s32.totalorder %s18, 3
    %p351 = pnand %p349, %p350
    %p352 = pneg %p351
    // Predicated region
    $region57: #{basic_forward.1} parent=5 // pred_check
      _
    $region58: #{basic_forward.1} parent=5 // pred_check_branch
      %354 = sbr.rel (%p351) target = $region60
    $region59: #{basic_forward.1} parent=5 // pred_region
      %s355 = ssub.s32 %s18, 1
      %p356 = scmp.lt.s32.totalorder %s23, 1
      %s357 = scalar_select %p356, %s23, 1
      %s358 = smul.addr %s357, 2
      %s359 = smul.addr %s358, 4
      %s360 = scalar_lea.vmem %s0, %s359
      %p361 = pneg %p44
      %p362 = pneg %p41
      %p363 = scmp.lt.s32.totalorder %s23, 1
      %s364 = scalar_select %p363, %s23, 1
      %s365 = smul.addr %s364, 2
      %s366 = smul.addr %s365, 4
      %s367 = scalar_lea.vmem %s1, %s366
      %p368 = pneg %p70
      %p369 = pneg %p67
      %p370 = pneg %p91
      %p371 = pneg %p88
      %p372 = pneg %p112
      %p373 = pneg %p109
      %p374 = pneg %p133
      %p375 = pneg %p130
      %p376 = pneg %p154
      %p377 = pneg %p151
      %p378 = pneg %p175
      %p379 = pneg %p172
      %p380 = pneg %p196
      %p381 = pneg %p193
      %p382 = pneg %p217
      %p383 = pneg %p214
      %p384 = pneg %p238
      %p385 = pneg %p235
      %p386 = pneg %p264
      %p387 = pneg %p261
      %p388 = scmp.lt.s32.totalorder %s23, 1
      %s389 = scalar_select %p388, %s23, 1
      %s390 = smul.addr %s389, 2
      %s391 = smul.addr %s390, 8
      %s392 = scalar_lea.vmem %s10, %s391
      %p393 = pneg %p290
      %p394 = pneg %p287
      %p395 = scmp.lt.s32.totalorder %s23, 1
      %s396 = scalar_select %p395, %s23, 1
      %s397 = smul.addr %s396, 2
      %s398 = scalar_lea.vmem %s11, %s397
      %p399 = scmp.lt.s32.totalorder %s23, 1
      %s400 = scalar_select %p399, %s23, 1
      %s401 = smul.addr %s400, 2
      %s402 = smul.addr %s401, 4
      %s403 = scalar_lea.vmem %s0, %s402
      %p404 = scmp.lt.s32.totalorder %s23, 1
      %s405 = scalar_select %p404, %s23, 1
      %s406 = smul.addr %s405, 2
      %s407 = smul.addr %s406, 4
      %s408 = scalar_lea.vmem %s1, %s407
      %p409 = scmp.lt.s32.totalorder %s23, 1
      %s410 = scalar_select %p409, %s23, 1
      %s411 = smul.addr %s410, 2
      %s412 = smul.addr %s411, 8
      %s413 = scalar_lea.vmem %s10, %s412
      %p414 = scmp.lt.s32.totalorder %s23, 1
      %s415 = scalar_select %p414, %s23, 1
      %s416 = smul.addr %s415, 2
      %s417 = scalar_lea.vmem %s11, %s416
      %v418 = vld [vmem:[%s403] sm:$0xff]
      %v419 = vld [vmem:[%s408] sm:$0xff]
      %v420 = vlaneseq
      %v421 = vand.u32 %v420, 127
      %v422 = vadd.s32 %v421, 128
      %vm423 = vcmp.lt.s32.totalorder %v421, 0
      %v424 = vsub.s32 0, %v421
      %v425 = vsel %vm423, %v424, %v421
      %v426 = vshrl.u32 %v425, 4
      %v427 = vand.u32 %v425, 15
      %v428 = vsub.s32 0, %v427
      %v429 = vsel %vm423, %v428, %v427
      %vm430 = vcmp.lt.s32.totalorder %v422, 0
      %v431 = vsub.s32 0, %v422
      %v432 = vsel %vm430, %v431, %v422
      %v433 = vshrl.u32 %v432, 4
      %v434 = vand.u32 %v432, 15
      %v435 = vsub.s32 0, %v434
      %v436 = vsel %vm430, %v435, %v434
      %vm437 = vcmp.ne.s32.totalorder %v429, 0
      %vm438 = vcmp.ne.s32.totalorder %v436, 0
      %vm439 = vcmp.lt.s32.totalorder %v429, 0
      %vm440 = vcmp.lt.s32.totalorder %v436, 0
      %vm441 = vmand %vm439, %vm437
      %vm442 = vmand %vm440, %vm438
      %v443 = vadd.s32 %v429, 16
      %v444 = vadd.s32 %v436, 16
      %v445 = vsel %vm441, %v443, %v429
      %v446 = vsel %vm442, %v444, %v436
      %vm447 = vcmp.ge.s32.totalorder %v445, 1
      %vm448 = vcmp.ge.s32.totalorder %v446, 1
      %v449 = vsel %vm447, 1, 0
      %v450 = vsel %vm448, 1, 0
      %v451 = vcvt.s32.f32 %v449
      %v452 = vcvt.s32.f32 %v450
      %vm453 = vcmp.le.s32.totalorder %v445, 14
      %vm454 = vcmp.le.s32.totalorder %v446, 14
      %v455 = vsel %vm453, 1, 0
      %v456 = vsel %vm454, 1, 0
      %v457 = vcvt.s32.f32 %v455
      %v458 = vcvt.s32.f32 %v456
      %vm459 = vcmp.gt.f32.partialorder %v418, 0.0
      %v460 = vld [vmem:[%s2] sm:$0xf]
      %462 = vset.pattern.permute.xlu0 0
      %463 = vperm.xlu0 %462, %v460
      %v464 = vpop.permute.xlu0 %463
      %v467 = vcombine.high %v418, %v418
      %v469 = vmul.f32 %v464, %v418
      %v470 = vmul.f32 %v464, %v467
      %v473 = vcombine.low %v469, %v470
      %v475 = vsel %vm459, %v418, %v473
      %v477 = vcombine.high %v419, %v419
      %vm479 = vcmask 1043456
      %v480 = vsel %vm479, %v419, 0.0
      %v481 = vrot.slane %v480, 4
      %v482 = vadd.f32 %v480, %v481
      %v483 = vrot.slane %v482, 2
      %v484 = vadd.f32 %v482, %v483
      %v485 = vrot.slane %v484, 1
      %v486 = vadd.f32 %v484, %v485
      %v487 = vsel %vm479, %v477, 0.0
      %v488 = vrot.slane %v487, 4
      %v489 = vadd.f32 %v487, %v488
      %v490 = vrot.slane %v489, 2
      %v491 = vadd.f32 %v489, %v490
      %v492 = vrot.slane %v491, 1
      %v493 = vadd.f32 %v491, %v492
      %v494 = vmul.f32 %v475, %v419
      %v496 = vcombine.high %v494, %v494
      %v498 = vsel %vm479, %v494, %v486
      %v499 = vsel %vm479, %v496, %v493
      %502 = vrot.lane.b32.xlu0 %v498, 17
      %v503 = vpop.permute.xlu0 %502
      %504 = vrot.lane.b32.xlu0 %v499, 17
      %v505 = vpop.permute.xlu0 %504
      %vm506 = vcmask 138240
      %v507 = vsel %vm506, %v503, %v505
      %v510 = vsel %vm506, 0.0, %v503
      %v511 = vmul.f32 %v510, %v451
      %v512 = vmul.f32 %v507, %v452
      %513 = vrot.lane.b32.xlu0 %v498, 16
      %v514 = vpop.permute.xlu0 %513
      %515 = vrot.lane.b32.xlu0 %v499, 16
      %v516 = vpop.permute.xlu0 %515
      %vm517 = vcmask 130048
      %v518 = vsel %vm517, %v514, %v516
      %v520 = vsel %vm517, 0.0, %v514
      %521 = vrot.lane.b32.xlu0 %v498, 15
      %v522 = vpop.permute.xlu0 %521
      %523 = vrot.lane.b32.xlu0 %v499, 15
      %v524 = vpop.permute.xlu0 %523
      %vm525 = vcmask 121856
      %v526 = vsel %vm525, %v522, %v524
      %v529 = vsel %vm525, 0.0, %v522
      %v530 = vmul.f32 %v529, %v457
      %v531 = vmul.f32 %v526, %v458
      %v533 = vrot.slane %v520, 3
      %v534 = vrot.slane %v518, 3
      %v539 = vrot.slane %v530, 6
      %v540 = vrot.slane %v531, 6
      %vm543 = vcmask 1044480
      %v544 = vsel %vm543, %v511, %v533
      %v545 = vsel %vm543, %v512, %v534
      %vm546 = vcmask 1041408
      %v547 = vsel %vm546, %v533, %v539
      %v548 = vsel %vm546, %v534, %v540
      %v549 = vld [vmem:[%s3] sm:$0xff]
      %v550 = vld [vmem:[%s3 + $0x8] sm:$0x1]
      %551 = vrot.lane.b32.xlu0 %v498, 1
      %v552 = vpop.permute.xlu0 %551
      %553 = vrot.lane.b32.xlu0 %v499, 1
      %v554 = vpop.permute.xlu0 %553
      %vm555 = vcmask 7168
      %v556 = vsel %vm555, %v552, %v554
      %v559 = vsel %vm555, 0.0, %v552
      %v560 = vmul.f32 %v559, %v451
      %v561 = vmul.f32 %v556, %v452
      %562 = vrot.lane.b32.xlu0 %v498, 127
      %v563 = vpop.permute.xlu0 %562
      %564 = vrot.lane.b32.xlu0 %v499, 127
      %v565 = vpop.permute.xlu0 %564
      %vm566 = vcmask 1039360
      %v567 = vsel %vm566, %v563, %v565
      %v570 = vsel %vm566, %v565, 0.0
      %v571 = vmul.f32 %v567, %v457
      %v572 = vmul.f32 %v570, %v458
      %v573 = vrot.slane %v498, 3
      %v574 = vrot.slane %v499, 3
      %v579 = vrot.slane %v571, 6
      %v580 = vrot.slane %v572, 6
      %v583 = vsel %vm543, %v560, %v573
      %v584 = vsel %vm543, %v561, %v574
      %v585 = vsel %vm546, %v573, %v579
      %v586 = vsel %vm546, %v574, %v580
      %s587 = scalar_lea.vmem %s3, 16
      %v588 = vld [vmem:[%s587] sm:$0xff]
      %v589 = vld [vmem:[%s587 + $0x8] sm:$0x1]
      %v591 = vsel %vm525, %v588, 0
      %v594 = vsel %vm525, %v589, 0
      %vm596 = vcmask 1046528
      %v598 = vsel %vm596, %v585, 0
      %v601 = vsel %vm596, %v586, 0
      %603 = vmatprep.subr.mxu0 %v584
      %604 = vmatpush1.msra.mxu0 %v583
      %605 = vmatprep.subr.mxu0 %v601
      %606 = vmatpush1.msra.mxu0 %v598
      %607 = vmatprep.subr.mxu0 0.0
      %608 = vmatpush1.msra.mxu0 0.0
      %609 = vmatprep.subr.mxu0 0.0
      %610 = vmatpush1.msra.mxu0 0.0
      %611 = vmatprep.subr.mxu0 0.0
      %612 = vmatpush1.msra.mxu0 0.0
      %613 = vmatprep.subr.mxu0 0.0
      %614 = vmatpush1.msra.mxu0 0.0
      %615 = vmatprep.subr.mxu0 0.0
      %616 = vmatpush1.msra.mxu0 0.0
      %617 = vmatprep.subr.mxu0 0.0
      %618 = vmatpush1.msra.mxu0 0.0
      %619 = vmatprep.subr.mxu0 0.0
      %620 = vmatpush1.msra.mxu0 0.0
      %621 = vmatprep.subr.mxu0 0.0
      %622 = vmatpush1.msra.mxu0 0.0
      %623 = vmatprep.subr.mxu0 0.0
      %624 = vmatpush1.msra.mxu0 0.0
      %625 = vmatprep.subr.mxu0 0.0
      %626 = vmatpush1.msra.mxu0 0.0
      %627 = vmatprep.subr.mxu0 0.0
      %628 = vmatpush1.msra.mxu0 0.0
      %629 = vmatprep.subr.mxu0 0.0
      %630 = vmatpush1.msra.mxu0 0.0
      %631 = vmatprep.subr.mxu0 0.0
      %632 = vmatpush1.msra.mxu0 0.0
      %633 = vmatprep.subr.mxu0 0.0
      %634 = vmatpush1.msra.mxu0 0.0
      %635 = vmatprep.subr.mxu0 0.0
      %636 = vmatpush1.msra.mxu0 0.0
      %637 = vmatprep.subr.mxu0 0.0
      %638 = vmatpush1.msra.mxu0 0.0
      %639 = vmatprep.subr.mxu0 0.0
      %640 = vmatpush1.msra.mxu0 0.0
      %641 = vmatprep.subr.mxu0 0.0
      %642 = vmatpush1.msra.mxu0 0.0
      %643 = vmatprep.subr.mxu0 0.0
      %644 = vmatpush1.msra.mxu0 0.0
      %645 = vmatprep.subr.mxu0 0.0
      %646 = vmatpush1.msra.mxu0 0.0
      %647 = vmatprep.subr.mxu0 0.0
      %648 = vmatpush1.msra.mxu0 0.0
      %649 = vmatprep.subr.mxu0 0.0
      %650 = vmatpush1.msra.mxu0 0.0
      %651 = vmatprep.subr.mxu0 0.0
      %652 = vmatpush1.msra.mxu0 0.0
      %653 = vmatprep.subr.mxu0 0.0
      %654 = vmatpush1.msra.mxu0 0.0
      %655 = vmatprep.subr.mxu0 0.0
      %656 = vmatpush1.msra.mxu0 0.0
      %657 = vmatprep.subr.mxu0 0.0
      %658 = vmatpush1.msra.mxu0 0.0
      %659 = vmatprep.subr.mxu0 0.0
      %660 = vmatpush1.msra.mxu0 0.0
      %661 = vmatprep.subr.mxu0 0.0
      %662 = vmatpush1.msra.mxu0 0.0
      %663 = vmatprep.subr.mxu0 0.0
      %664 = vmatpush1.msra.mxu0 0.0
      %665 = vmatprep.subr.mxu0 0.0
      %666 = vmatpush1.msra.mxu0 0.0
      %667 = vmatprep.mubr.f32.mxu0 0.0
      %668 = vmatmul.mubr.f32.gmra.mrb[0].mxu0 %v591
      %v669 = vpop.f32.mrb[0].mxu0
      %v670 = vadd.f32 0.0, %v669
      %v671 = vpop.f32.mrb[0].mxu0
      %v672 = vadd.f32 0.0, %v671
      %673 = vmatprep.mubr.f32.mxu0 0.0
      %674 = vmatmul.mubr.f32.gmra.mrb[0].mxu0 %v594
      %v675 = vpop.f32.mrb[0].mxu0
      %v676 = vadd.f32 0.0, %v675
      %v677 = vpop.f32.mrb[0].mxu0
      %v678 = vadd.f32 0.0, %v677
      %679 = vdwg.mxu0
      %v681 = vsel %vm525, %v549, 0
      %v684 = vsel %vm525, %v550, 0
      %v687 = vsel %vm596, %v547, 0
      %v690 = vsel %vm596, %v548, 0
      %692 = vmatprep.subr.mxu0 %v545
      %693 = vmatpush1.msra.mxu0 %v544
      %694 = vmatprep.subr.mxu0 %v690
      %695 = vmatpush1.msra.mxu0 %v687
      %696 = vmatprep.subr.mxu0 0.0
      %697 = vmatpush1.msra.mxu0 0.0
      %698 = vmatprep.subr.mxu0 0.0
      %699 = vmatpush1.msra.mxu0 0.0
      %700 = vmatprep.subr.mxu0 0.0
      %701 = vmatpush1.msra.mxu0 0.0
      %702 = vmatprep.subr.mxu0 0.0
      %703 = vmatpush1.msra.mxu0 0.0
      %704 = vmatprep.subr.mxu0 0.0
      %705 = vmatpush1.msra.mxu0 0.0
      %706 = vmatprep.subr.mxu0 0.0
      %707 = vmatpush1.msra.mxu0 0.0
      %708 = vmatprep.subr.mxu0 0.0
      %709 = vmatpush1.msra.mxu0 0.0
      %710 = vmatprep.subr.mxu0 0.0
      %711 = vmatpush1.msra.mxu0 0.0
      %712 = vmatprep.subr.mxu0 0.0
      %713 = vmatpush1.msra.mxu0 0.0
      %714 = vmatprep.subr.mxu0 0.0
      %715 = vmatpush1.msra.mxu0 0.0
      %716 = vmatprep.subr.mxu0 0.0
      %717 = vmatpush1.msra.mxu0 0.0
      %718 = vmatprep.subr.mxu0 0.0
      %719 = vmatpush1.msra.mxu0 0.0
      %720 = vmatprep.subr.mxu0 0.0
      %721 = vmatpush1.msra.mxu0 0.0
      %722 = vmatprep.subr.mxu0 0.0
      %723 = vmatpush1.msra.mxu0 0.0
      %724 = vmatprep.subr.mxu0 0.0
      %725 = vmatpush1.msra.mxu0 0.0
      %726 = vmatprep.subr.mxu0 0.0
      %727 = vmatpush1.msra.mxu0 0.0
      %728 = vmatprep.subr.mxu0 0.0
      %729 = vmatpush1.msra.mxu0 0.0
      %730 = vmatprep.subr.mxu0 0.0
      %731 = vmatpush1.msra.mxu0 0.0
      %732 = vmatprep.subr.mxu0 0.0
      %733 = vmatpush1.msra.mxu0 0.0
      %734 = vmatprep.subr.mxu0 0.0
      %735 = vmatpush1.msra.mxu0 0.0
      %736 = vmatprep.subr.mxu0 0.0
      %737 = vmatpush1.msra.mxu0 0.0
      %738 = vmatprep.subr.mxu0 0.0
      %739 = vmatpush1.msra.mxu0 0.0
      %740 = vmatprep.subr.mxu0 0.0
      %741 = vmatpush1.msra.mxu0 0.0
      %742 = vmatprep.subr.mxu0 0.0
      %743 = vmatpush1.msra.mxu0 0.0
      %744 = vmatprep.subr.mxu0 0.0
      %745 = vmatpush1.msra.mxu0 0.0
      %746 = vmatprep.subr.mxu0 0.0
      %747 = vmatpush1.msra.mxu0 0.0
      %748 = vmatprep.subr.mxu0 0.0
      %749 = vmatpush1.msra.mxu0 0.0
      %750 = vmatprep.subr.mxu0 0.0
      %751 = vmatpush1.msra.mxu0 0.0
      %752 = vmatprep.subr.mxu0 0.0
      %753 = vmatpush1.msra.mxu0 0.0
      %754 = vmatprep.subr.mxu0 0.0
      %755 = vmatpush1.msra.mxu0 0.0
      %756 = vmatprep.mubr.f32.mxu0 0.0
      %757 = vmatmul.mubr.f32.gmra.mrb[0].mxu0 %v681
      %v758 = vpop.f32.mrb[0].mxu0
      %v759 = vadd.f32 %v670, %v758
      %v760 = vpop.f32.mrb[0].mxu0
      %v761 = vadd.f32 %v672, %v760
      %762 = vmatprep.mubr.f32.mxu0 0.0
      %763 = vmatmul.mubr.f32.gmra.mrb[0].mxu0 %v684
      %v764 = vpop.f32.mrb[0].mxu0
      %v765 = vadd.f32 %v676, %v764
      %v766 = vpop.f32.mrb[0].mxu0
      %v767 = vadd.f32 %v678, %v766
      %768 = vdwg.mxu0
      %769 = vrot.lane.b32.xlu0 %v498, 113
      %v770 = vpop.permute.xlu0 %769
      %771 = vrot.lane.b32.xlu0 %v499, 113
      %v772 = vpop.permute.xlu0 %771
      %vm773 = vcmask 924672
      %v774 = vsel %vm773, %v770, %v772
      %v777 = vsel %vm773, %v772, 0.0
      %v778 = vmul.f32 %v774, %v451
      %v779 = vmul.f32 %v777, %v452
      %780 = vrot.lane.b32.xlu0 %v498, 112
      %v781 = vpop.permute.xlu0 %780
      %782 = vrot.lane.b32.xlu0 %v499, 112
      %v783 = vpop.permute.xlu0 %782
      %vm784 = vcmask 916480
      %v785 = vsel %vm784, %v781, %v783
      %v787 = vsel %vm784, %v783, 0.0
      %788 = vrot.lane.b32.xlu0 %v498, 111
      %v789 = vpop.permute.xlu0 %788
      %790 = vrot.lane.b32.xlu0 %v499, 111
      %v791 = vpop.permute.xlu0 %790
      %vm792 = vcmask 908288
      %v793 = vsel %vm792, %v789, %v791
      %v796 = vsel %vm792, %v791, 0.0
      %v797 = vmul.f32 %v793, %v457
      %v798 = vmul.f32 %v796, %v458
      %v800 = vrot.slane %v785, 3
      %v801 = vrot.slane %v787, 3
      %v806 = vrot.slane %v797, 6
      %v807 = vrot.slane %v798, 6
      %v810 = vsel %vm543, %v778, %v800
      %v811 = vsel %vm543, %v779, %v801
      %v812 = vsel %vm546, %v800, %v806
      %v813 = vsel %vm546, %v801, %v807
      %s814 = scalar_lea.vmem %s3, 32
      %v815 = vld [vmem:[%s814] sm:$0xff]
      %v816 = vld [vmem:[%s814 + $0x8] sm:$0x1]
      %v818 = vsel %vm525, %v815, 0
      %v821 = vsel %vm525, %v816, 0
      %v824 = vsel %vm596, %v812, 0
      %v827 = vsel %vm596, %v813, 0
      %829 = vmatprep.subr.mxu0 %v811
      %830 = vmatpush1.msra.mxu0 %v810
      %831 = vmatprep.subr.mxu0 %v827
      %832 = vmatpush1.msra.mxu0 %v824
      %833 = vmatprep.subr.mxu0 0.0
      %834 = vmatpush1.msra.mxu0 0.0
      %835 = vmatprep.subr.mxu0 0.0
      %836 = vmatpush1.msra.mxu0 0.0
      %837 = vmatprep.subr.mxu0 0.0
      %838 = vmatpush1.msra.mxu0 0.0
      %839 = vmatprep.subr.mxu0 0.0
      %840 = vmatpush1.msra.mxu0 0.0
      %841 = vmatprep.subr.mxu0 0.0
      %842 = vmatpush1.msra.mxu0 0.0
      %843 = vmatprep.subr.mxu0 0.0
      %844 = vmatpush1.msra.mxu0 0.0
      %845 = vmatprep.subr.mxu0 0.0
      %846 = vmatpush1.msra.mxu0 0.0
      %847 = vmatprep.subr.mxu0 0.0
      %848 = vmatpush1.msra.mxu0 0.0
      %849 = vmatprep.subr.mxu0 0.0
      %850 = vmatpush1.msra.mxu0 0.0
      %851 = vmatprep.subr.mxu0 0.0
      %852 = vmatpush1.msra.mxu0 0.0
      %853 = vmatprep.subr.mxu0 0.0
      %854 = vmatpush1.msra.mxu0 0.0
      %855 = vmatprep.subr.mxu0 0.0
      %856 = vmatpush1.msra.mxu0 0.0
      %857 = vmatprep.subr.mxu0 0.0
      %858 = vmatpush1.msra.mxu0 0.0
      %859 = vmatprep.subr.mxu0 0.0
      %860 = vmatpush1.msra.mxu0 0.0
      %861 = vmatprep.subr.mxu0 0.0
      %862 = vmatpush1.msra.mxu0 0.0
      %863 = vmatprep.subr.mxu0 0.0
      %864 = vmatpush1.msra.mxu0 0.0
      %865 = vmatprep.subr.mxu0 0.0
      %866 = vmatpush1.msra.mxu0 0.0
      %867 = vmatprep.subr.mxu0 0.0
      %868 = vmatpush1.msra.mxu0 0.0
      %869 = vmatprep.subr.mxu0 0.0
      %870 = vmatpush1.msra.mxu0 0.0
      %871 = vmatprep.subr.mxu0 0.0
      %872 = vmatpush1.msra.mxu0 0.0
      %873 = vmatprep.subr.mxu0 0.0
      %874 = vmatpush1.msra.mxu0 0.0
      %875 = vmatprep.subr.mxu0 0.0
      %876 = vmatpush1.msra.mxu0 0.0
      %877 = vmatprep.subr.mxu0 0.0
      %878 = vmatpush1.msra.mxu0 0.0
      %879 = vmatprep.subr.mxu0 0.0
      %880 = vmatpush1.msra.mxu0 0.0
      %881 = vmatprep.subr.mxu0 0.0
      %882 = vmatpush1.msra.mxu0 0.0
      %883 = vmatprep.subr.mxu0 0.0
      %884 = vmatpush1.msra.mxu0 0.0
      %885 = vmatprep.subr.mxu0 0.0
      %886 = vmatpush1.msra.mxu0 0.0
      %887 = vmatprep.subr.mxu0 0.0
      %888 = vmatpush1.msra.mxu0 0.0
      %889 = vmatprep.subr.mxu0 0.0
      %890 = vmatpush1.msra.mxu0 0.0
      %891 = vmatprep.subr.mxu0 0.0
      %892 = vmatpush1.msra.mxu0 0.0
      %893 = vmatprep.mubr.f32.mxu0 0.0
      %894 = vmatmul.mubr.f32.gmra.mrb[0].mxu0 %v818
      %v895 = vpop.f32.mrb[0].mxu0
      %v896 = vadd.f32 0.0, %v895
      %v897 = vpop.f32.mrb[0].mxu0
      %v898 = vadd.f32 0.0, %v897
      %899 = vmatprep.mubr.f32.mxu0 0.0
      %900 = vmatmul.mubr.f32.gmra.mrb[0].mxu0 %v821
      %v901 = vpop.f32.mrb[0].mxu0
      %v902 = vadd.f32 0.0, %v901
      %v903 = vpop.f32.mrb[0].mxu0
      %v904 = vadd.f32 0.0, %v903
      %905 = vdwg.mxu0
      %v906 = vadd.f32 %v759, %v896
      %v907 = vadd.f32 %v761, %v898
      %v908 = vadd.f32 %v765, %v902
      %v909 = vadd.f32 %v767, %v904
      %v910 = vmax.f32 %v908, 0.0
      %v911 = vmax.f32 %v909, 0.0
      %v912 = vmin.f32 %v910, 1.0
      %v913 = vmin.f32 %v911, 1.0
      %v914 = vadd.f32 %v908, 1e-08
      %v915 = vadd.f32 %v909, 1e-08
      %v916 = vrcp.pop %v914
      %v917 = vrcp.pop %v915
      %v918 = vmul.f32 %v914, %v916
      %v919 = vmul.f32 %v915, %v917
      %v920 = vsub.f32 2.0, %v918
      %v921 = vsub.f32 2.0, %v919
      %v922 = vmul.f32 %v916, %v920
      %v923 = vmul.f32 %v917, %v921
      %v924 = vmul.f32 %v922, 36.0
      %v925 = vmul.f32 %v923, 36.0
      %v926 = vmul.f32 %v924, %v912
      %v927 = vmul.f32 %v925, %v913
      %v928 = vlaneseq
      %v929 = vshrl.u32 %v928, 7
      %v930 = vsub.s32 0, %v929
      %v931 = vrot.slane %v926, %v930
      %v932 = vlaneseq
      %v933 = vshrl.u32 %v932, 7
      %v934 = vsub.s32 0, %v933
      %v935 = vrot.slane %v927, %v934
      %v936 = vmul.f32 %v906, %v931
      %v937 = vmul.f32 %v907, %v935
      %v938 = vld [vmem:[%s4] sm:$0xff]
      %940 = vset.pattern.permute.xlu0 0
      %941 = vperm.xlu0 %940, %v938
      %v942 = vpop.permute.xlu0 %941
      %v944 = vadd.f32 %v936, %v942
      %v945 = vadd.f32 %v937, %v942
      %v946 = vlaneseq
      %v947 = vshrl.u32 %v946, 7
      %v948 = vsub.s32 0, %v947
      %v949 = vrot.slane %v912, %v948
      %v950 = vlaneseq
      %v951 = vshrl.u32 %v950, 7
      %v952 = vsub.s32 0, %v951
      %v953 = vrot.slane %v913, %v952
      %v954 = vmul.f32 %v944, %v949
      %v955 = vmul.f32 %v945, %v953
      %vm956 = vcmp.gt.f32.partialorder %v954, 0.0
      %vm957 = vcmp.gt.f32.partialorder %v955, 0.0
      %v958 = vld [vmem:[%s5] sm:$0xff]
      %960 = vset.pattern.permute.xlu0 0
      %961 = vperm.xlu0 %960, %v958
      %v962 = vpop.permute.xlu0 %961
      %v964 = vmul.f32 %v962, %v954
      %v965 = vmul.f32 %v962, %v955
      %v966 = vsel %vm956, %v954, %v964
      %v967 = vsel %vm957, %v955, %v965
      %v968 = vmul.f32 %v966, %v949
      %v969 = vmul.f32 %v967, %v953
      %974 = vrot.lane.b32.xlu0 %v968, 17
      %v975 = vpop.permute.xlu0 %974
      %976 = vrot.lane.b32.xlu0 %v969, 17
      %v977 = vpop.permute.xlu0 %976
      %978 = vrot.lane.b32.xlu0 %v912, 17
      %v979 = vpop.permute.xlu0 %978
      %980 = vrot.lane.b32.xlu0 %v913, 17
      %v981 = vpop.permute.xlu0 %980
      %v982 = vsel %vm506, %v975, %v977
      %v983 = vsel %vm506, %v979, %v981
      %v988 = vsel %vm506, 0.0, %v975
      %v989 = vsel %vm506, 0.0, %v979
      %v990 = vmul.f32 %v988, %v451
      %v991 = vmul.f32 %v982, %v452
      %v992 = vmul.f32 %v989, %v451
      %v993 = vmul.f32 %v983, %v452
      %994 = vrot.lane.b32.xlu0 %v968, 16
      %v995 = vpop.permute.xlu0 %994
      %996 = vrot.lane.b32.xlu0 %v969, 16
      %v997 = vpop.permute.xlu0 %996
      %998 = vrot.lane.b32.xlu0 %v912, 16
      %v999 = vpop.permute.xlu0 %998
      %1000 = vrot.lane.b32.xlu0 %v913, 16
      %v1001 = vpop.permute.xlu0 %1000
      %v1002 = vsel %vm517, %v995, %v997
      %v1003 = vsel %vm517, %v999, %v1001
      %v1006 = vsel %vm517, 0.0, %v995
      %v1007 = vsel %vm517, 0.0, %v999
      %1008 = vrot.lane.b32.xlu0 %v968, 15
      %v1009 = vpop.permute.xlu0 %1008
      %1010 = vrot.lane.b32.xlu0 %v969, 15
      %v1011 = vpop.permute.xlu0 %1010
      %1012 = vrot.lane.b32.xlu0 %v912, 15
      %v1013 = vpop.permute.xlu0 %1012
      %1014 = vrot.lane.b32.xlu0 %v913, 15
      %v1015 = vpop.permute.xlu0 %1014
      %v1016 = vsel %vm525, %v1009, %v1011
      %v1017 = vsel %vm525, %v1013, %v1015
      %v1022 = vsel %vm525, 0.0, %v1009
      %v1023 = vsel %vm525, 0.0, %v1013
      %v1024 = vmul.f32 %v1022, %v457
      %v1025 = vmul.f32 %v1016, %v458
      %v1026 = vmul.f32 %v1023, %v457
      %v1027 = vmul.f32 %v1017, %v458
      %vm1030 = vcmask 1040384
      %v1031 = vrot.slane %v1006, 7
      %v1032 = vrot.slane %v1002, 7
      %v1033 = vrot.slane %v1007, 7
      %v1034 = vsel %vm1030, %v1031, %v1033
      %v1035 = vrot.slane %v1003, 7
      %v1036 = vsel %vm1030, %v1032, %v1035
      %v1045 = vrot.slane %v1024, 6
      %v1046 = vrot.slane %v1025, 6
      %v1047 = vrot.slane %v1026, 6
      %v1048 = vsel %vm546, %v1045, %v1047
      %v1049 = vrot.slane %v1027, 6
      %v1050 = vsel %vm546, %v1046, %v1049
      %v1053 = vsel %vm1030, %v992, %v1031
      %v1054 = vsel %vm1030, %v993, %v1032
      %v1055 = vsel %vm546, %v1034, %v1045
      %v1056 = vsel %vm546, %v1036, %v1046
      %v1057 = vld [vmem:[%s6] sm:$0x7f]
      %1058 = vrot.lane.b32.xlu0 %v968, 1
      %v1059 = vpop.permute.xlu0 %1058
      %1060 = vrot.lane.b32.xlu0 %v969, 1
      %v1061 = vpop.permute.xlu0 %1060
      %1062 = vrot.lane.b32.xlu0 %v912, 1
      %v1063 = vpop.permute.xlu0 %1062
      %1064 = vrot.lane.b32.xlu0 %v913, 1
      %v1065 = vpop.permute.xlu0 %1064
      %v1066 = vsel %vm555, %v1059, %v1061
      %v1067 = vsel %vm555, %v1063, %v1065
      %v1072 = vsel %vm555, 0.0, %v1059
      %v1073 = vsel %vm555, 0.0, %v1063
      %v1074 = vmul.f32 %v1072, %v451
      %v1075 = vmul.f32 %v1066, %v452
      %v1076 = vmul.f32 %v1073, %v451
      %v1077 = vmul.f32 %v1067, %v452
      %1078 = vrot.lane.b32.xlu0 %v968, 127
      %v1079 = vpop.permute.xlu0 %1078
      %1080 = vrot.lane.b32.xlu0 %v969, 127
      %v1081 = vpop.permute.xlu0 %1080
      %1082 = vrot.lane.b32.xlu0 %v912, 127
      %v1083 = vpop.permute.xlu0 %1082
      %1084 = vrot.lane.b32.xlu0 %v913, 127
      %v1085 = vpop.permute.xlu0 %1084
      %v1086 = vsel %vm566, %v1079, %v1081
      %v1087 = vsel %vm566, %v1083, %v1085
      %v1092 = vsel %vm566, %v1081, 0.0
      %v1093 = vsel %vm566, %v1085, 0.0
      %v1094 = vmul.f32 %v1086, %v457
      %v1095 = vmul.f32 %v1092, %v458
      %v1096 = vmul.f32 %v1087, %v457
      %v1097 = vmul.f32 %v1093, %v458
      %v1098 = vrot.slane %v968, 7
      %v1099 = vrot.slane %v969, 7
      %v1100 = vrot.slane %v912, 7
      %v1101 = vsel %vm1030, %v1098, %v1100
      %v1102 = vrot.slane %v913, 7
      %v1103 = vsel %vm1030, %v1099, %v1102
      %v1112 = vrot.slane %v1094, 6
      %v1113 = vrot.slane %v1095, 6
      %v1114 = vrot.slane %v1096, 6
      %v1115 = vsel %vm546, %v1112, %v1114
      %v1116 = vrot.slane %v1097, 6
      %v1117 = vsel %vm546, %v1113, %v1116
      %v1120 = vsel %vm1030, %v1076, %v1098
      %v1121 = vsel %vm1030, %v1077, %v1099
      %v1122 = vsel %vm546, %v1101, %v1112
      %v1123 = vsel %vm546, %v1103, %v1113
      %s1124 = scalar_lea.vmem %s6, 8
      %v1125 = vld [vmem:[%s1124] sm:$0x7f]
      %vm1126 = vcmask 220160
      %v1128 = vsel %vm1126, %v1125, 0
      %vm1130 = vcmask 1042432
      %v1131 = vsel %vm1130, %v1115, 0
      %v1133 = vsel %vm1130, %v1117, 0
      %1135 = vmatprep.subr.mxu0 %v1075
      %1136 = vmatpush1.msra.mxu0 %v1074
      %1137 = vmatprep.subr.mxu0 %v1121
      %1138 = vmatpush1.msra.mxu0 %v1120
      %1139 = vmatprep.subr.mxu0 %v1123
      %1140 = vmatpush1.msra.mxu0 %v1122
      %1141 = vmatprep.subr.mxu0 %v1133
      %1142 = vmatpush1.msra.mxu0 %v1131
      %1143 = vmatprep.subr.mxu0 0.0
      %1144 = vmatpush1.msra.mxu0 0.0
      %1145 = vmatprep.subr.mxu0 0.0
      %1146 = vmatpush1.msra.mxu0 0.0
      %1147 = vmatprep.subr.mxu0 0.0
      %1148 = vmatpush1.msra.mxu0 0.0
      %1149 = vmatprep.subr.mxu0 0.0
      %1150 = vmatpush1.msra.mxu0 0.0
      %1151 = vmatprep.subr.mxu0 0.0
      %1152 = vmatpush1.msra.mxu0 0.0
      %1153 = vmatprep.subr.mxu0 0.0
      %1154 = vmatpush1.msra.mxu0 0.0
      %1155 = vmatprep.subr.mxu0 0.0
      %1156 = vmatpush1.msra.mxu0 0.0
      %1157 = vmatprep.subr.mxu0 0.0
      %1158 = vmatpush1.msra.mxu0 0.0
      %1159 = vmatprep.subr.mxu0 0.0
      %1160 = vmatpush1.msra.mxu0 0.0
      %1161 = vmatprep.subr.mxu0 0.0
      %1162 = vmatpush1.msra.mxu0 0.0
      %1163 = vmatprep.subr.mxu0 0.0
      %1164 = vmatpush1.msra.mxu0 0.0
      %1165 = vmatprep.subr.mxu0 0.0
      %1166 = vmatpush1.msra.mxu0 0.0
      %1167 = vmatprep.subr.mxu0 0.0
      %1168 = vmatpush1.msra.mxu0 0.0
      %1169 = vmatprep.subr.mxu0 0.0
      %1170 = vmatpush1.msra.mxu0 0.0
      %1171 = vmatprep.subr.mxu0 0.0
      %1172 = vmatpush1.msra.mxu0 0.0
      %1173 = vmatprep.subr.mxu0 0.0
      %1174 = vmatpush1.msra.mxu0 0.0
      %1175 = vmatprep.subr.mxu0 0.0
      %1176 = vmatpush1.msra.mxu0 0.0
      %1177 = vmatprep.subr.mxu0 0.0
      %1178 = vmatpush1.msra.mxu0 0.0
      %1179 = vmatprep.subr.mxu0 0.0
      %1180 = vmatpush1.msra.mxu0 0.0
      %1181 = vmatprep.subr.mxu0 0.0
      %1182 = vmatpush1.msra.mxu0 0.0
      %1183 = vmatprep.subr.mxu0 0.0
      %1184 = vmatpush1.msra.mxu0 0.0
      %1185 = vmatprep.subr.mxu0 0.0
      %1186 = vmatpush1.msra.mxu0 0.0
      %1187 = vmatprep.subr.mxu0 0.0
      %1188 = vmatpush1.msra.mxu0 0.0
      %1189 = vmatprep.subr.mxu0 0.0
      %1190 = vmatpush1.msra.mxu0 0.0
      %1191 = vmatprep.subr.mxu0 0.0
      %1192 = vmatpush1.msra.mxu0 0.0
      %1193 = vmatprep.subr.mxu0 0.0
      %1194 = vmatpush1.msra.mxu0 0.0
      %1195 = vmatprep.subr.mxu0 0.0
      %1196 = vmatpush1.msra.mxu0 0.0
      %1197 = vmatprep.subr.mxu0 0.0
      %1198 = vmatpush1.msra.mxu0 0.0
      %1199 = vmatprep.mubr.f32.mxu0 0.0
      %1200 = vmatmul.mubr.f32.gmra.mrb[0].mxu0 %v1128
      %v1201 = vpop.f32.mrb[0].mxu0
      %v1202 = vadd.f32 0.0, %v1201
      %v1203 = vpop.f32.mrb[0].mxu0
      %v1204 = vadd.f32 0.0, %v1203
      %1205 = vdwg.mxu0
      %v1207 = vsel %vm1126, %v1057, 0
      %v1209 = vsel %vm1130, %v1048, 0
      %v1211 = vsel %vm1130, %v1050, 0
      %1213 = vmatprep.subr.mxu0 %v991
      %1214 = vmatpush1.msra.mxu0 %v990
      %1215 = vmatprep.subr.mxu0 %v1054
      %1216 = vmatpush1.msra.mxu0 %v1053
      %1217 = vmatprep.subr.mxu0 %v1056
      %1218 = vmatpush1.msra.mxu0 %v1055
      %1219 = vmatprep.subr.mxu0 %v1211
      %1220 = vmatpush1.msra.mxu0 %v1209
      %1221 = vmatprep.subr.mxu0 0.0
      %1222 = vmatpush1.msra.mxu0 0.0
      %1223 = vmatprep.subr.mxu0 0.0
      %1224 = vmatpush1.msra.mxu0 0.0
      %1225 = vmatprep.subr.mxu0 0.0
      %1226 = vmatpush1.msra.mxu0 0.0
      %1227 = vmatprep.subr.mxu0 0.0
      %1228 = vmatpush1.msra.mxu0 0.0
      %1229 = vmatprep.subr.mxu0 0.0
      %1230 = vmatpush1.msra.mxu0 0.0
      %1231 = vmatprep.subr.mxu0 0.0
      %1232 = vmatpush1.msra.mxu0 0.0
      %1233 = vmatprep.subr.mxu0 0.0
      %1234 = vmatpush1.msra.mxu0 0.0
      %1235 = vmatprep.subr.mxu0 0.0
      %1236 = vmatpush1.msra.mxu0 0.0
      %1237 = vmatprep.subr.mxu0 0.0
      %1238 = vmatpush1.msra.mxu0 0.0
      %1239 = vmatprep.subr.mxu0 0.0
      %1240 = vmatpush1.msra.mxu0 0.0
      %1241 = vmatprep.subr.mxu0 0.0
      %1242 = vmatpush1.msra.mxu0 0.0
      %1243 = vmatprep.subr.mxu0 0.0
      %1244 = vmatpush1.msra.mxu0 0.0
      %1245 = vmatprep.subr.mxu0 0.0
      %1246 = vmatpush1.msra.mxu0 0.0
      %1247 = vmatprep.subr.mxu0 0.0
      %1248 = vmatpush1.msra.mxu0 0.0
      %1249 = vmatprep.subr.mxu0 0.0
      %1250 = vmatpush1.msra.mxu0 0.0
      %1251 = vmatprep.subr.mxu0 0.0
      %1252 = vmatpush1.msra.mxu0 0.0
      %1253 = vmatprep.subr.mxu0 0.0
      %1254 = vmatpush1.msra.mxu0 0.0
      %1255 = vmatprep.subr.mxu0 0.0
      %1256 = vmatpush1.msra.mxu0 0.0
      %1257 = vmatprep.subr.mxu0 0.0
      %1258 = vmatpush1.msra.mxu0 0.0
      %1259 = vmatprep.subr.mxu0 0.0
      %1260 = vmatpush1.msra.mxu0 0.0
      %1261 = vmatprep.subr.mxu0 0.0
      %1262 = vmatpush1.msra.mxu0 0.0
      %1263 = vmatprep.subr.mxu0 0.0
      %1264 = vmatpush1.msra.mxu0 0.0
      %1265 = vmatprep.subr.mxu0 0.0
      %1266 = vmatpush1.msra.mxu0 0.0
      %1267 = vmatprep.subr.mxu0 0.0
      %1268 = vmatpush1.msra.mxu0 0.0
      %1269 = vmatprep.subr.mxu0 0.0
      %1270 = vmatpush1.msra.mxu0 0.0
      %1271 = vmatprep.subr.mxu0 0.0
      %1272 = vmatpush1.msra.mxu0 0.0
      %1273 = vmatprep.subr.mxu0 0.0
      %1274 = vmatpush1.msra.mxu0 0.0
      %1275 = vmatprep.subr.mxu0 0.0
      %1276 = vmatpush1.msra.mxu0 0.0
      %1277 = vmatprep.mubr.f32.mxu0 0.0
      %1278 = vmatmul.mubr.f32.gmra.mrb[0].mxu0 %v1207
      %v1279 = vpop.f32.mrb[0].mxu0
      %v1280 = vadd.f32 %v1202, %v1279
      %v1281 = vpop.f32.mrb[0].mxu0
      %v1282 = vadd.f32 %v1204, %v1281
      %1283 = vdwg.mxu0
      %1284 = vrot.lane.b32.xlu0 %v968, 113
      %v1285 = vpop.permute.xlu0 %1284
      %1286 = vrot.lane.b32.xlu0 %v969, 113
      %v1287 = vpop.permute.xlu0 %1286
      %1288 = vrot.lane.b32.xlu0 %v912, 113
      %v1289 = vpop.permute.xlu0 %1288
      %1290 = vrot.lane.b32.xlu0 %v913, 113
      %v1291 = vpop.permute.xlu0 %1290
      %v1292 = vsel %vm773, %v1285, %v1287
      %v1293 = vsel %vm773, %v1289, %v1291
      %v1298 = vsel %vm773, %v1287, 0.0
      %v1299 = vsel %vm773, %v1291, 0.0
      %v1300 = vmul.f32 %v1292, %v451
      %v1301 = vmul.f32 %v1298, %v452
      %v1302 = vmul.f32 %v1293, %v451
      %v1303 = vmul.f32 %v1299, %v452
      %1304 = vrot.lane.b32.xlu0 %v968, 112
      %v1305 = vpop.permute.xlu0 %1304
      %1306 = vrot.lane.b32.xlu0 %v969, 112
      %v1307 = vpop.permute.xlu0 %1306
      %1308 = vrot.lane.b32.xlu0 %v912, 112
      %v1309 = vpop.permute.xlu0 %1308
      %1310 = vrot.lane.b32.xlu0 %v913, 112
      %v1311 = vpop.permute.xlu0 %1310
      %v1312 = vsel %vm784, %v1305, %v1307
      %v1313 = vsel %vm784, %v1309, %v1311
      %v1316 = vsel %vm784, %v1307, 0.0
      %v1317 = vsel %vm784, %v1311, 0.0
      %1318 = vrot.lane.b32.xlu0 %v968, 111
      %v1319 = vpop.permute.xlu0 %1318
      %1320 = vrot.lane.b32.xlu0 %v969, 111
      %v1321 = vpop.permute.xlu0 %1320
      %1322 = vrot.lane.b32.xlu0 %v912, 111
      %v1323 = vpop.permute.xlu0 %1322
      %1324 = vrot.lane.b32.xlu0 %v913, 111
      %v1325 = vpop.permute.xlu0 %1324
      %v1326 = vsel %vm792, %v1319, %v1321
      %v1327 = vsel %vm792, %v1323, %v1325
      %v1332 = vsel %vm792, %v1321, 0.0
      %v1333 = vsel %vm792, %v1325, 0.0
      %v1334 = vmul.f32 %v1326, %v457
      %v1335 = vmul.f32 %v1332, %v458
      %v1336 = vmul.f32 %v1327, %v457
      %v1337 = vmul.f32 %v1333, %v458
      %v1340 = vrot.slane %v1312, 7
      %v1341 = vrot.slane %v1316, 7
      %v1342 = vrot.slane %v1313, 7
      %v1343 = vsel %vm1030, %v1340, %v1342
      %v1344 = vrot.slane %v1317, 7
      %v1345 = vsel %vm1030, %v1341, %v1344
      %v1354 = vrot.slane %v1334, 6
      %v1355 = vrot.slane %v1335, 6
      %v1356 = vrot.slane %v1336, 6
      %v1357 = vsel %vm546, %v1354, %v1356
      %v1358 = vrot.slane %v1337, 6
      %v1359 = vsel %vm546, %v1355, %v1358
      %v1362 = vsel %vm1030, %v1302, %v1340
      %v1363 = vsel %vm1030, %v1303, %v1341
      %v1364 = vsel %vm546, %v1343, %v1354
      %v1365 = vsel %vm546, %v1345, %v1355
      %s1366 = scalar_lea.vmem %s6, 16
      %v1367 = vld [vmem:[%s1366] sm:$0x7f]
      %v1369 = vsel %vm1126, %v1367, 0
      %v1371 = vsel %vm1130, %v1357, 0
      %v1373 = vsel %vm1130, %v1359, 0
      %1375 = vmatprep.subr.mxu0 %v1301
      %1376 = vmatpush1.msra.mxu0 %v1300
      %1377 = vmatprep.subr.mxu0 %v1363
      %1378 = vmatpush1.msra.mxu0 %v1362
      %1379 = vmatprep.subr.mxu0 %v1365
      %1380 = vmatpush1.msra.mxu0 %v1364
      %1381 = vmatprep.subr.mxu0 %v1373
      %1382 = vmatpush1.msra.mxu0 %v1371
      %1383 = vmatprep.subr.mxu0 0.0
      %1384 = vmatpush1.msra.mxu0 0.0
      %1385 = vmatprep.subr.mxu0 0.0
      %1386 = vmatpush1.msra.mxu0 0.0
      %1387 = vmatprep.subr.mxu0 0.0
      %1388 = vmatpush1.msra.mxu0 0.0
      %1389 = vmatprep.subr.mxu0 0.0
      %1390 = vmatpush1.msra.mxu0 0.0
      %1391 = vmatprep.subr.mxu0 0.0
      %1392 = vmatpush1.msra.mxu0 0.0
      %1393 = vmatprep.subr.mxu0 0.0
      %1394 = vmatpush1.msra.mxu0 0.0
      %1395 = vmatprep.subr.mxu0 0.0
      %1396 = vmatpush1.msra.mxu0 0.0
      %1397 = vmatprep.subr.mxu0 0.0
      %1398 = vmatpush1.msra.mxu0 0.0
      %1399 = vmatprep.subr.mxu0 0.0
      %1400 = vmatpush1.msra.mxu0 0.0
      %1401 = vmatprep.subr.mxu0 0.0
      %1402 = vmatpush1.msra.mxu0 0.0
      %1403 = vmatprep.subr.mxu0 0.0
      %1404 = vmatpush1.msra.mxu0 0.0
      %1405 = vmatprep.subr.mxu0 0.0
      %1406 = vmatpush1.msra.mxu0 0.0
      %1407 = vmatprep.subr.mxu0 0.0
      %1408 = vmatpush1.msra.mxu0 0.0
      %1409 = vmatprep.subr.mxu0 0.0
      %1410 = vmatpush1.msra.mxu0 0.0
      %1411 = vmatprep.subr.mxu0 0.0
      %1412 = vmatpush1.msra.mxu0 0.0
      %1413 = vmatprep.subr.mxu0 0.0
      %1414 = vmatpush1.msra.mxu0 0.0
      %1415 = vmatprep.subr.mxu0 0.0
      %1416 = vmatpush1.msra.mxu0 0.0
      %1417 = vmatprep.subr.mxu0 0.0
      %1418 = vmatpush1.msra.mxu0 0.0
      %1419 = vmatprep.subr.mxu0 0.0
      %1420 = vmatpush1.msra.mxu0 0.0
      %1421 = vmatprep.subr.mxu0 0.0
      %1422 = vmatpush1.msra.mxu0 0.0
      %1423 = vmatprep.subr.mxu0 0.0
      %1424 = vmatpush1.msra.mxu0 0.0
      %1425 = vmatprep.subr.mxu0 0.0
      %1426 = vmatpush1.msra.mxu0 0.0
      %1427 = vmatprep.subr.mxu0 0.0
      %1428 = vmatpush1.msra.mxu0 0.0
      %1429 = vmatprep.subr.mxu0 0.0
      %1430 = vmatpush1.msra.mxu0 0.0
      %1431 = vmatprep.subr.mxu0 0.0
      %1432 = vmatpush1.msra.mxu0 0.0
      %1433 = vmatprep.subr.mxu0 0.0
      %1434 = vmatpush1.msra.mxu0 0.0
      %1435 = vmatprep.subr.mxu0 0.0
      %1436 = vmatpush1.msra.mxu0 0.0
      %1437 = vmatprep.subr.mxu0 0.0
      %1438 = vmatpush1.msra.mxu0 0.0
      %1439 = vmatprep.mubr.f32.mxu0 0.0
      %1440 = vmatmul.mubr.f32.gmra.mrb[0].mxu0 %v1369
      %v1441 = vpop.f32.mrb[0].mxu0
      %v1442 = vadd.f32 0.0, %v1441
      %v1443 = vpop.f32.mrb[0].mxu0
      %v1444 = vadd.f32 0.0, %v1443
      %1445 = vdwg.mxu0
      %v1446 = vadd.f32 %v1280, %v1442
      %v1447 = vadd.f32 %v1282, %v1444
      %v1448 = vmax.f32 %v1446, 0.0
      %v1449 = vmax.f32 %v1447, 0.0
      %v1450 = vmin.f32 %v1448, 1.0
      %v1451 = vmin.f32 %v1449, 1.0
      %v1452 = vadd.f32 %v1446, 1e-08
      %v1453 = vadd.f32 %v1447, 1e-08
      %v1454 = vrcp.pop %v1452
      %v1455 = vrcp.pop %v1453
      %v1456 = vmul.f32 %v1452, %v1454
      %v1457 = vmul.f32 %v1453, %v1455
      %v1458 = vsub.f32 2.0, %v1456
      %v1459 = vsub.f32 2.0, %v1457
      %v1460 = vmul.f32 %v1454, %v1458
      %v1461 = vmul.f32 %v1455, %v1459
      %v1462 = vmul.f32 %v1460, 72.0
      %v1463 = vmul.f32 %v1461, 72.0
      %v1464 = vmul.f32 %v1462, %v1450
      %v1465 = vmul.f32 %v1463, %v1451
      %v1466 = vlaneseq
      %v1467 = vshrl.u32 %v1466, 7
      %v1468 = vsub.s32 6, %v1467
      %v1469 = vrot.slane %v1464, %v1468
      %v1470 = vlaneseq
      %v1471 = vshrl.u32 %v1470, 7
      %v1472 = vsub.s32 6, %v1471
      %v1473 = vrot.slane %v1465, %v1472
      %v1474 = vmul.f32 %v1446, %v1469
      %v1475 = vmul.f32 %v1447, %v1473
      %v1476 = vld [vmem:[%s7] sm:$0x3f]
      %1478 = vset.pattern.permute.xlu0 0
      %1479 = vperm.xlu0 %1478, %v1476
      %v1480 = vpop.permute.xlu0 %1479
      %v1482 = vadd.f32 %v1474, %v1480
      %v1483 = vadd.f32 %v1475, %v1480
      %v1484 = vlaneseq
      %v1485 = vshrl.u32 %v1484, 7
      %v1486 = vsub.s32 6, %v1485
      %v1487 = vrot.slane %v1450, %v1486
      %v1488 = vlaneseq
      %v1489 = vshrl.u32 %v1488, 7
      %v1490 = vsub.s32 6, %v1489
      %v1491 = vrot.slane %v1451, %v1490
      %v1492 = vmul.f32 %v1482, %v1487
      %v1493 = vmul.f32 %v1483, %v1491
      %v1494 = vld [vmem:[%s8] sm:$0x3f]
      %v1495 = vld [vmem:[%s9] sm:$0x3f]
      %1497 = vset.pattern.permute.xlu0 0
      %1498 = vperm.xlu0 %1497, %v1495
      %v1499 = vpop.permute.xlu0 %1498
      %vm1501 = vcmask 31744
      %v1503 = vsel %vm1501, %v1494, 0
      %v1505 = vsel %vm479, %v418, 0
      %v1507 = vsel %vm479, %v467, 0
      %1509 = vmatprep.subr.mxu0 %v1507
      %1510 = vmatpush1.msra.mxu0 %v1505
      %1511 = vmatprep.subr.mxu0 0.0
      %1512 = vmatpush1.msra.mxu0 0.0
      %1513 = vmatprep.subr.mxu0 0.0
      %1514 = vmatpush1.msra.mxu0 0.0
      %1515 = vmatprep.subr.mxu0 0.0
      %1516 = vmatpush1.msra.mxu0 0.0
      %1517 = vmatprep.subr.mxu0 0.0
      %1518 = vmatpush1.msra.mxu0 0.0
      %1519 = vmatprep.subr.mxu0 0.0
      %1520 = vmatpush1.msra.mxu0 0.0
      %1521 = vmatprep.subr.mxu0 0.0
      %1522 = vmatpush1.msra.mxu0 0.0
      %1523 = vmatprep.subr.mxu0 0.0
      %1524 = vmatpush1.msra.mxu0 0.0
      %1525 = vmatprep.subr.mxu0 0.0
      %1526 = vmatpush1.msra.mxu0 0.0
      %1527 = vmatprep.subr.mxu0 0.0
      %1528 = vmatpush1.msra.mxu0 0.0
      %1529 = vmatprep.subr.mxu0 0.0
      %1530 = vmatpush1.msra.mxu0 0.0
      %1531 = vmatprep.subr.mxu0 0.0
      %1532 = vmatpush1.msra.mxu0 0.0
      %1533 = vmatprep.subr.mxu0 0.0
      %1534 = vmatpush1.msra.mxu0 0.0
      %1535 = vmatprep.subr.mxu0 0.0
      %1536 = vmatpush1.msra.mxu0 0.0
      %1537 = vmatprep.subr.mxu0 0.0
      %1538 = vmatpush1.msra.mxu0 0.0
      %1539 = vmatprep.subr.mxu0 0.0
      %1540 = vmatpush1.msra.mxu0 0.0
      %1541 = vmatprep.subr.mxu0 0.0
      %1542 = vmatpush1.msra.mxu0 0.0
      %1543 = vmatprep.subr.mxu0 0.0
      %1544 = vmatpush1.msra.mxu0 0.0
      %1545 = vmatprep.subr.mxu0 0.0
      %1546 = vmatpush1.msra.mxu0 0.0
      %1547 = vmatprep.subr.mxu0 0.0
      %1548 = vmatpush1.msra.mxu0 0.0
      %1549 = vmatprep.subr.mxu0 0.0
      %1550 = vmatpush1.msra.mxu0 0.0
      %1551 = vmatprep.subr.mxu0 0.0
      %1552 = vmatpush1.msra.mxu0 0.0
      %1553 = vmatprep.subr.mxu0 0.0
      %1554 = vmatpush1.msra.mxu0 0.0
      %1555 = vmatprep.subr.mxu0 0.0
      %1556 = vmatpush1.msra.mxu0 0.0
      %1557 = vmatprep.subr.mxu0 0.0
      %1558 = vmatpush1.msra.mxu0 0.0
      %1559 = vmatprep.subr.mxu0 0.0
      %1560 = vmatpush1.msra.mxu0 0.0
      %1561 = vmatprep.subr.mxu0 0.0
      %1562 = vmatpush1.msra.mxu0 0.0
      %1563 = vmatprep.subr.mxu0 0.0
      %1564 = vmatpush1.msra.mxu0 0.0
      %1565 = vmatprep.subr.mxu0 0.0
      %1566 = vmatpush1.msra.mxu0 0.0
      %1567 = vmatprep.subr.mxu0 0.0
      %1568 = vmatpush1.msra.mxu0 0.0
      %1569 = vmatprep.subr.mxu0 0.0
      %1570 = vmatpush1.msra.mxu0 0.0
      %1571 = vmatprep.subr.mxu0 0.0
      %1572 = vmatpush1.msra.mxu0 0.0
      %1573 = vmatprep.mubr.f32.mxu0 0.0
      %1574 = vmatmul.mubr.f32.gmra.mrb[0].mxu0 %v1503
      %v1575 = vpop.f32.mrb[0].mxu0
      %v1576 = vadd.f32 %v1499, %v1575
      %v1577 = vpop.f32.mrb[0].mxu0
      %v1578 = vadd.f32 %v1499, %v1577
      %1579 = vdwg.mxu0
      %v1580 = vadd.f32 %v1492, %v1576
      %v1581 = vadd.f32 %v1493, %v1578
      %1582 = vst [vmem:[%s413] sm:$0x3f] %v1580
      %1583 = vst [vmem:[%s413 + $0x8] sm:$0x3f] %v1581
      %v1586 = vcombine.high %v1450, %v1451
      %v1588 = vunpack.c.l.s4 1966171168
      %v1589 = vunpack.c.0.s8 %v1588
      %v1590 = vlaneseq
      %v1591 = vshrl.u32 %v1590, 7
      %v1592 = vsub.s32 %v1589, %v1591
      %v1593 = vrot.slane %v1586, %v1592
      %v1595 = vunpack.c.l.s4 1966171168
      %v1596 = vunpack.c.0.s8 %v1595
      %v1597 = vlaneseq
      %v1598 = vshrl.u32 %v1597, 7
      %v1599 = vsub.s32 %v1596, %v1598
      %v1600 = vrot.slane %v1593, %v1599
      %v1601 = vcombine.high %v1600, %v1600
      %v1603 = vlaneseq
      %vm1604 = vcmp.ge.s32.totalorder %v1603, 0
      %vm1605 = vcmp.lt.s32.totalorder %v1603, 256
      %vm1606 = vmand %vm1604, %vm1605
      %1607 = vst.msk [vmem:[%s417] sm:$0x3] %vm1606, %v1601
      %p1608 = scmp.lt.s32.totalorder %s23, 1
      %s1609 = scalar_select %p1608, %s23, 1
      %s1610 = smul.addr %s1609, 2
      %s1611 = smul.addr %s1610, 8
      %s1612 = scalar_lea.vmem %s10, %s1611
      %p1613 = scmp.lt.s32.totalorder %s23, 1
      %s1614 = scalar_select %p1613, %s23, 1
      %s1615 = smul.addr %s1614, 2
      %s1616 = scalar_lea.vmem %s11, %s1615
      // Predicated region
      $region61: #{basic_forward.1} parent=59 // pred_check
        %p1617 = pneg %p261
      $region62: #{basic_forward.1} parent=59 // pred_check_branch
        %1619 = sbr.rel (%p1617) target = $region64
      $region63: #{basic_forward.1} parent=59 // pred_region
        _
      $region64: #{basic_forward.1} parent=59 // pred_fallthru
        _
      // Predicated region
      $region65: #{basic_forward.1} parent=59 // pred_check
        %p1620 = pneg %p287
      $region66: #{basic_forward.1} parent=59 // pred_check_branch
        %1622 = sbr.rel (%p1620) target = $region68
      $region67: #{basic_forward.1} parent=59 // pred_region
        _
      $region68: #{basic_forward.1} parent=59 // pred_fallthru
        _
    $region60: #{basic_forward.1} parent=5 // pred_fallthru
      _
    %p1623 = scmp.le.s32.totalorder 2, %s18
    // Predicated region
    $region69: #{basic_forward.1} parent=5 // pred_check
      %p1624 = pneg %p1623
    $region70: #{basic_forward.1} parent=5 // pred_check_branch
      %1626 = sbr.rel (%p1624) target = $region72
    $region71: #{basic_forward.1} parent=5 // pred_region
      %s1627 = ssub.s32 %s18, 2
      // Predicated region
      $region73: #{basic_forward.1} parent=71 // pred_check
        %p1628 = pneg %p267
      $region74: #{basic_forward.1} parent=71 // pred_check_branch
        %1630 = sbr.rel (%p1628) target = $region76
      $region75: #{basic_forward.1} parent=71 // pred_region
        %p1631 = scmp.lt.s32.totalorder %s24, 1
        %s1632 = scalar_select %p1631, %s24, 1
        %s1633 = smul.addr %s1632, 2
        %s1634 = smul.addr %s1633, 8
        %s1635 = scalar_lea.vmem %s10, %s1634
      $region76: #{basic_forward.1} parent=71 // pred_fallthru
        _
      // Predicated region
      $region77: #{basic_forward.1} parent=71 // pred_check
        %p1636 = pneg %p293
      $region78: #{basic_forward.1} parent=71 // pred_check_branch
        %1638 = sbr.rel (%p1636) target = $region80
      $region79: #{basic_forward.1} parent=71 // pred_region
        %p1639 = scmp.lt.s32.totalorder %s24, 1
        %s1640 = scalar_select %p1639, %s24, 1
        %s1641 = smul.addr %s1640, 2
        %s1642 = scalar_lea.vmem %s11, %s1641
      $region80: #{basic_forward.1} parent=71 // pred_fallthru
        _
    $region72: #{basic_forward.1} parent=5 // pred_fallthru
      _
  $region6: #{basic_forward.1} parent=0 // loop_footer
    %s22 = sadd.s32 1, %s18
  $region7: #{basic_forward.1} parent=0 // loop_footer_branch
    %17 = sbr.rel target = $region3
  $region8: #{basic_forward.1} parent=0 // loop_exit
    _

</llo_original>
